<compile_context>
chip_gen: v5e
topology: v5e:2x2
jax: 0.10.0
libtpu: 0.0.40
codegen_flags: <defaults>
</compile_context>

<pallas_src>
import jax
import jax.numpy as jnp
from jax.experimental import pallas as pl
from jax.experimental.pallas import tpu as pltpu


def _round_up(x, m):
    return ((x + m - 1) // m) * m


def _token_counts_t(ids_ref, v_size, v_off, dtype):
    """Token-count matrix, transposed: [v_size, bb] with the batch on the lane axis."""
    S = ids_ref.shape[0]
    bb = ids_ref.shape[1]
    vocab = jax.lax.broadcasted_iota(jnp.int32, (v_size, bb), 0) + v_off
    counts0 = (ids_ref[0:1, :] == vocab).astype(dtype)
    if S == 1:
        return counts0

    def body(s, c):
        return c + (ids_ref[pl.ds(s, 1), :] == vocab).astype(dtype)

    # TODO(synk): for S > 256 bf16 counts may round; switch dtype to f32 in that regime.
    return jax.lax.fori_loop(1, S, body, counts0, unroll=(S <= 32))


def _gates_to_logprobs_t(gates_t, w_out_ref, b_out_ref):
    """[3*Dp, bb] fused (i, g, o) pre-activations -> [2, bb] log-probabilities."""
    Dp = w_out_ref.shape[1]
    i_g = jax.nn.sigmoid(gates_t[0 * Dp:1 * Dp, :])
    g_g = jnp.tanh(gates_t[1 * Dp:2 * Dp, :])
    o_g = jax.nn.sigmoid(gates_t[2 * Dp:3 * Dp, :])
    # c = i*g (f*c0 == 0); padded lanes are killed by zero-padded w_out columns.
    h_t = (o_g * jnp.tanh(i_g * g_g)).astype(w_out_ref.dtype)            # [Dp, bb]
    logits_t = (jnp.dot(w_out_ref[...], h_t, preferred_element_type=jnp.float32)
                + b_out_ref[...])                                        # [2, bb]
    l0 = logits_t[0:1, :]
    l1 = logits_t[1:2, :]
    m = jnp.maximum(l0, l1)
    lse = m + jnp.log(jnp.exp(l0 - m) + jnp.exp(l1 - m))                 # [1, bb]
    return logits_t - lse


def _bow_fused_kernel(ids_ref, w_fused_ref, b_g_ref, w_out_ref, b_out_ref, out_ref):
    # Small-vocab path: gates = W_fused @ counts + b,  W_fused = (W_gates @ emb.T)/S.
    V = w_fused_ref.shape[1]
    counts = _token_counts_t(ids_ref, V, 0, w_fused_ref.dtype)           # [V, bb]
    gates = (jnp.dot(w_fused_ref[...], counts, preferred_element_type=jnp.float32)
             + b_g_ref[...])                                             # [3*Dp, bb]
    out_ref[...] = _gates_to_logprobs_t(gates, w_out_ref, b_out_ref).astype(out_ref.dtype)


def _bow_twostage_kernel(ids_ref, emb_t_ref, w_g_ref, b_g_ref, w_out_ref, b_out_ref,
                         out_ref, bow_acc_ref):
    # General path: vocab axis is gridded; bow accumulated in a VMEM scratch.
    k = pl.program_id(1)
    v_tile = emb_t_ref.shape[1]

    @pl.when(k == 0)
    def _():
        bow_acc_ref[...] = jnp.zeros_like(bow_acc_ref)

    counts = _token_counts_t(ids_ref, v_tile, k * v_tile, emb_t_ref.dtype)   # [v_tile, bb]
    bow_acc_ref[...] += jnp.dot(emb_t_ref[...], counts,
                                preferred_element_type=jnp.float32)          # [D, bb]

    @pl.when(k == pl.num_programs(1) - 1)
    def _():
        bow = bow_acc_ref[...].astype(w_g_ref.dtype)                         # [D, bb]
        gates = (jnp.dot(w_g_ref[...], bow, preferred_element_type=jnp.float32)
                 + b_g_ref[...])                                             # [3*Dp, bb]
        out_ref[...] = _gates_to_logprobs_t(gates, w_out_ref, b_out_ref).astype(out_ref.dtype)


def bow_model_forward(token_ids, params, *, max_block_b=512, max_vocab_tile=2048,
                      compute_dtype=jnp.bfloat16):
    """token_ids: int [B, S].  Returns log-probabilities [B, 2].

    Assumes the module's zero initial hidden state (h0 = c0 = 0), so the W_hh term and
    the forget-gate term of the single LSTM step are exactly zero.
    """
    emb = params["embedding"].astype(jnp.float32)                        # [V, D]
    V, D = emb.shape
    B, S = token_ids.shape
    Dp = _round_up(D, 128)          # pad each gate to 128 lanes -> vreg-aligned gate slices

    # PyTorch LSTM gate order (i, f, g, o).  Drop f; keep the native [out, in] row layout.
    w_ih = params["w_ih"].astype(jnp.float32)                            # [4D, D]
    bias = (params["b_ih"] + params["b_hh"]).astype(jnp.float32)         # [4D]

    def pad_rows(w):                                                     # [D, D] -> [Dp, D]
        return jnp.pad(w, ((0, Dp - D), (0, 0)))

    def pad_vec(v):                                                      # [D] -> [Dp]
        return jnp.pad(v, (0, Dp - D))

    w_rows = jnp.concatenate([pad_rows(w_ih[0 * D:1 * D]),               # i
                              pad_rows(w_ih[2 * D:3 * D]),               # g
                              pad_rows(w_ih[3 * D:4 * D])], axis=0)      # o  -> [3Dp, D]
    b_g = jnp.concatenate([pad_vec(bias[0 * D:1 * D]),
                           pad_vec(bias[2 * D:3 * D]),
                           pad_vec(bias[3 * D:4 * D])]).reshape(3 * Dp, 1)        # f32
    w_out = jnp.pad(params["w_out"].astype(jnp.float32),
                    ((0, 0), (0, Dp - D))).astype(compute_dtype)         # [2, Dp]
    b_out = params["b_out"].astype(jnp.float32).reshape(2, 1)

    # Batch tiling: batch lives on the lane axis, so blocked tiles must be 128-aligned.
    if B <= 256:
        bb, b_pad = B, B                                   # single full-batch block
    else:
        bb = min(max_block_b, _round_up(pl.cdiv(B, 2), 128))   # >=2 grid steps (v7x megacore)
        b_pad = _round_up(B, bb)
    n_bb = b_pad // bb

    ids_t = token_ids.astype(jnp.int32).T                                # [S, B]
    if b_pad != B:
        ids_t = jnp.pad(ids_t, ((0, 0), (0, b_pad - B)))                 # pad cols use token 0

    use_fused = 2 * V <= 3 * D       # pre-fuse emb into gate weights only for small vocab

    if use_fused:
        w_fused = ((w_rows @ emb.T) * (1.0 / S)).astype(compute_dtype)   # [3Dp, V]
        grid = (n_bb,)
        kernel = _bow_fused_kernel
        args = (ids_t, w_fused, b_g, w_out, b_out)
        in_specs = [
            pl.BlockSpec((S, bb), lambda i: (0, i)),
            pl.BlockSpec((3 * Dp, V), lambda i: (0, 0), pipeline_mode=pl.Buffered(1)),
            pl.BlockSpec((3 * Dp, 1), lambda i: (0, 0), pipeline_mode=pl.Buffered(1)),
            pl.BlockSpec((2, Dp), lambda i: (0, 0), pipeline_mode=pl.Buffered(1)),
            pl.BlockSpec((2, 1), lambda i: (0, 0), pipeline_mode=pl.Buffered(1)),
        ]
        out_specs = pl.BlockSpec((2, bb), lambda i: (0, i))
        scratch_shapes = []
        dim_sem = ("parallel",)
        needed = (2 * S * bb * 4 + 3 * Dp * V * 2 + 3 * Dp * 4 + 2 * Dp * 2 + 2 * 4
                  + 2 * 2 * bb * 4 + V * bb * 2 + 4 * Dp * bb * 4)
    else:
        if V <= max_vocab_tile:
            v_tile, v_pad = V, V
        else:
            v_tile = max_vocab_tile                                      # multiple of 128
            v_pad = _round_up(V, v_tile)
        emb_t = emb.T                                                    # [D, V]
        if v_pad != V:
            emb_t = jnp.pad(emb_t, ((0, 0), (0, v_pad - V)))
        emb_t = emb_t.astype(compute_dtype)
        w_g = (w_rows * (1.0 / S)).astype(compute_dtype)                 # 1/S mean folded in
        n_vb = v_pad // v_tile
        grid = (n_bb, n_vb)
        kernel = _bow_twostage_kernel
        args = (ids_t, emb_t, w_g, b_g, w_out, b_out)
        in_specs = [
            pl.BlockSpec((S, bb), lambda i, k: (0, i)),
            pl.BlockSpec((D, v_tile), lambda i, k: (0, k)),
            pl.BlockSpec((3 * Dp, D), lambda i, k: (0, 0), pipeline_mode=pl.Buffered(1)),
            pl.BlockSpec((3 * Dp, 1), lambda i, k: (0, 0), pipeline_mode=pl.Buffered(1)),
            pl.BlockSpec((2, Dp), lambda i, k: (0, 0), pipeline_mode=pl.Buffered(1)),
            pl.BlockSpec((2, 1), lambda i, k: (0, 0), pipeline_mode=pl.Buffered(1)),
        ]
        out_specs = pl.BlockSpec((2, bb), lambda i, k: (0, i))
        scratch_shapes = [pltpu.VMEM((D, bb), jnp.float32)]
        dim_sem = ("parallel", "arbitrary")
        needed = (2 * S * bb * 4 + 2 * D * v_tile * 2 + 3 * Dp * D * 2 + 3 * Dp * 4
                  + 2 * Dp * 2 + 2 * 4 + 2 * 2 * bb * 4 + D * bb * 4
                  + v_tile * bb * 2 + 4 * Dp * bb * 4)

    vmem_limit = int(min(100 * 1024 * 1024, max(32 * 1024 * 1024, 2 * needed)))

    out_t = pl.pallas_call(
        kernel,
        out_shape=jax.ShapeDtypeStruct((2, b_pad), jnp.float32),
        grid=grid,
        in_specs=in_specs,
        out_specs=out_specs,
        scratch_shapes=scratch_shapes,
        compiler_params=pltpu.CompilerParams(
            dimension_semantics=dim_sem,
            vmem_limit_bytes=vmem_limit),
    )(*args)
    return out_t[:, :B].T                                                # [B, 2]


def _reference_forward(token_ids, params):
    """Pure-JAX f32 reference matching the PyTorch module semantics."""
    emb = params["embedding"]
    D = emb.shape[1]
    embedded = jnp.take(emb, token_ids, axis=0)
    bow = embedded.mean(axis=1)
    gates = bow @ params["w_ih"].T + (params["b_ih"] + params["b_hh"])
    i_g = jax.nn.sigmoid(gates[:, 0:D])
    f_g = jax.nn.sigmoid(gates[:, D:2 * D])           # annihilated by c0 == 0
    g_g = jnp.tanh(gates[:, 2 * D:3 * D])
    o_g = jax.nn.sigmoid(gates[:, 3 * D:4 * D])
    c = i_g * g_g + f_g * 0.0
    h = o_g * jnp.tanh(c)
    logits = h @ params["w_out"].T + params["b_out"]
    return jax.nn.log_softmax(logits, axis=-1)


def _make_params(key, V, D):
    k_emb, k_wih, k_bih, k_bhh, k_wo, k_bo = jax.random.split(key, 6)
    emb_tensor = jax.random.normal(k_emb, (V, D), jnp.float32)
    emb_tensor = emb_tensor.at[0].set(0.0)            # conventional padding row (padding_idx=0)
    return {
        "embedding": emb_tensor,
        "w_ih": 0.1 * jax.random.normal(k_wih, (4 * D, D), jnp.float32),
        # w_hh would be [4D, D]; unused because h0 == 0 makes its term exactly zero.
        "b_ih": 0.1 * jax.random.normal(k_bih, (4 * D,), jnp.float32),
        "b_hh": 0.1 * jax.random.normal(k_bhh, (4 * D,), jnp.float32),
        "w_out": 0.1 * jax.random.normal(k_wo, (2, D), jnp.float32),
        "b_out": 0.1 * jax.random.normal(k_bo, (2,), jnp.float32),
    }


if __name__ == "__main__":
    key = jax.random.PRNGKey(0)

    # 1) module's nominal small shapes: small vocab -> fused path, grid=(1,)
    # 2) large batch -> blocked "parallel" batch axis (2 grid steps, lane-dense [2, bb] out)
    # 3) larger vocab + small vocab tile -> two-stage path with vocab-axis accumulation
    cases = [
        dict(B=2, S=8, V=16, D=32, kw={}),
        dict(B=300, S=8, V=16, D=32, kw={}),
        dict(B=4, S=5, V=256, D=32, kw=dict(max_vocab_tile=128)),
    ]
    for idx, c in enumerate(cases):
        k_p, k_ids, key = jax.random.split(key, 3)
        params = _make_params(k_p, c["V"], c["D"])
        token_ids = jax.random.randint(k_ids, (c["B"], c["S"]), 0, c["V"], dtype=jnp.int32)

        out = bow_model_forward(token_ids, params, **c["kw"])
        jax.block_until_ready(out)
        assert out.shape == (c["B"], 2), out.shape

        ref = _reference_forward(token_ids, params)
        # bf16 weights/counts reassociate f32 math -> loosened tolerance vs f32 reference.
        assert jnp.allclose(out, ref, atol=2e-2, rtol=2e-2), (idx, out, ref)

    print("KERNEL_OK")
</pallas_src>

<mosaic_0001>
module attributes {stable_mosaic.version = 11 : i64} {
  func.func @_bow_fused_kernel(%arg0: i32, %arg1: memref<8x2xi32, #tpu.memory_space<vmem>>, %arg2: memref<384x16xbf16, #tpu.memory_space<vmem>>, %arg3: memref<384x1xf32, #tpu.memory_space<vmem>>, %arg4: memref<2x128xbf16, #tpu.memory_space<vmem>>, %arg5: memref<2x1xf32, #tpu.memory_space<vmem>>, %arg6: memref<2x2xf32, #tpu.memory_space<vmem>>) attributes {dimension_semantics = [#tpu.dimension_semantics<parallel>], iteration_bounds = array<i64: 1>, scalar_prefetch = 0 : i64, scratch_operands = 0 : i64, tpu.core_type = #tpu.core_type<tc>, window_params = [{transform_indices = @transform_0, window_bounds = array<i64: 8, 2>}, {pipeline_mode = #tpu.pipeline_mode<synchronous>, transform_indices = @transform_1, window_bounds = array<i64: 384, 16>}, {pipeline_mode = #tpu.pipeline_mode<synchronous>, transform_indices = @transform_2, window_bounds = array<i64: 384, 1>}, {pipeline_mode = #tpu.pipeline_mode<synchronous>, transform_indices = @transform_3, window_bounds = array<i64: 2, 128>}, {pipeline_mode = #tpu.pipeline_mode<synchronous>, transform_indices = @transform_4, window_bounds = array<i64: 2, 1>}, {transform_indices = @transform_5, window_bounds = array<i64: 2, 2>}]} {
    %0 = tpu.iota {dimensions = array<i32: 0>} : vector<16x2xi32>
    %c0_i32 = arith.constant 0 : i32
    %1 = vector.broadcast %c0_i32 : i32 to vector<16x2xi32>
    %2 = arith.addi %0, %1 : vector<16x2xi32>
    %c0 = arith.constant 0 : index
    %c0_0 = arith.constant 0 : index
    %3 = vector.load %arg1[%c0, %c0_0] : memref<8x2xi32, #tpu.memory_space<vmem>>, vector<1x2xi32>
    %4 = vector.broadcast %3 : vector<1x2xi32> to vector<16x2xi32>
    %5 = arith.cmpi eq, %4, %2 : vector<16x2xi32>
    %6 = arith.extui %5 : vector<16x2xi1> to vector<16x2xi32>
    %7 = arith.sitofp %6 : vector<16x2xi32> to vector<16x2xf32>
    %8 = arith.truncf %7 : vector<16x2xf32> to vector<16x2xbf16>
    %c1_i32 = arith.constant 1 : i32
    %9 = arith.index_cast %c1_i32 : i32 to index
    %c0_1 = arith.constant 0 : index
    %10 = vector.load %arg1[%9, %c0_1] : memref<8x2xi32, #tpu.memory_space<vmem>>, vector<1x2xi32>
    %11 = vector.broadcast %10 : vector<1x2xi32> to vector<16x2xi32>
    %12 = arith.cmpi eq, %11, %2 : vector<16x2xi32>
    %13 = arith.extui %12 : vector<16x2xi1> to vector<16x2xi32>
    %14 = arith.sitofp %13 : vector<16x2xi32> to vector<16x2xf32>
    %15 = arith.truncf %14 : vector<16x2xf32> to vector<16x2xbf16>
    %16 = arith.addf %8, %15 : vector<16x2xbf16>
    %c2_i32 = arith.constant 2 : i32
    %17 = arith.index_cast %c2_i32 : i32 to index
    %c0_2 = arith.constant 0 : index
    %18 = vector.load %arg1[%17, %c0_2] : memref<8x2xi32, #tpu.memory_space<vmem>>, vector<1x2xi32>
    %19 = vector.broadcast %18 : vector<1x2xi32> to vector<16x2xi32>
    %20 = arith.cmpi eq, %19, %2 : vector<16x2xi32>
    %21 = arith.extui %20 : vector<16x2xi1> to vector<16x2xi32>
    %22 = arith.sitofp %21 : vector<16x2xi32> to vector<16x2xf32>
    %23 = arith.truncf %22 : vector<16x2xf32> to vector<16x2xbf16>
    %24 = arith.addf %16, %23 : vector<16x2xbf16>
    %c3_i32 = arith.constant 3 : i32
    %25 = arith.index_cast %c3_i32 : i32 to index
    %c0_3 = arith.constant 0 : index
    %26 = vector.load %arg1[%25, %c0_3] : memref<8x2xi32, #tpu.memory_space<vmem>>, vector<1x2xi32>
    %27 = vector.broadcast %26 : vector<1x2xi32> to vector<16x2xi32>
    %28 = arith.cmpi eq, %27, %2 : vector<16x2xi32>
    %29 = arith.extui %28 : vector<16x2xi1> to vector<16x2xi32>
    %30 = arith.sitofp %29 : vector<16x2xi32> to vector<16x2xf32>
    %31 = arith.truncf %30 : vector<16x2xf32> to vector<16x2xbf16>
    %32 = arith.addf %24, %31 : vector<16x2xbf16>
    %c4_i32 = arith.constant 4 : i32
    %33 = arith.index_cast %c4_i32 : i32 to index
    %c0_4 = arith.constant 0 : index
    %34 = vector.load %arg1[%33, %c0_4] : memref<8x2xi32, #tpu.memory_space<vmem>>, vector<1x2xi32>
    %35 = vector.broadcast %34 : vector<1x2xi32> to vector<16x2xi32>
    %36 = arith.cmpi eq, %35, %2 : vector<16x2xi32>
    %37 = arith.extui %36 : vector<16x2xi1> to vector<16x2xi32>
    %38 = arith.sitofp %37 : vector<16x2xi32> to vector<16x2xf32>
    %39 = arith.truncf %38 : vector<16x2xf32> to vector<16x2xbf16>
    %40 = arith.addf %32, %39 : vector<16x2xbf16>
    %c5_i32 = arith.constant 5 : i32
    %41 = arith.index_cast %c5_i32 : i32 to index
    %c0_5 = arith.constant 0 : index
    %42 = vector.load %arg1[%41, %c0_5] : memref<8x2xi32, #tpu.memory_space<vmem>>, vector<1x2xi32>
    %43 = vector.broadcast %42 : vector<1x2xi32> to vector<16x2xi32>
    %44 = arith.cmpi eq, %43, %2 : vector<16x2xi32>
    %45 = arith.extui %44 : vector<16x2xi1> to vector<16x2xi32>
    %46 = arith.sitofp %45 : vector<16x2xi32> to vector<16x2xf32>
    %47 = arith.truncf %46 : vector<16x2xf32> to vector<16x2xbf16>
    %48 = arith.addf %40, %47 : vector<16x2xbf16>
    %c6_i32 = arith.constant 6 : i32
    %49 = arith.index_cast %c6_i32 : i32 to index
    %c0_6 = arith.constant 0 : index
    %50 = vector.load %arg1[%49, %c0_6] : memref<8x2xi32, #tpu.memory_space<vmem>>, vector<1x2xi32>
    %51 = vector.broadcast %50 : vector<1x2xi32> to vector<16x2xi32>
    %52 = arith.cmpi eq, %51, %2 : vector<16x2xi32>
    %53 = arith.extui %52 : vector<16x2xi1> to vector<16x2xi32>
    %54 = arith.sitofp %53 : vector<16x2xi32> to vector<16x2xf32>
    %55 = arith.truncf %54 : vector<16x2xf32> to vector<16x2xbf16>
    %56 = arith.addf %48, %55 : vector<16x2xbf16>
    %c7_i32 = arith.constant 7 : i32
    %57 = arith.index_cast %c7_i32 : i32 to index
    %c0_7 = arith.constant 0 : index
    %58 = vector.load %arg1[%57, %c0_7] : memref<8x2xi32, #tpu.memory_space<vmem>>, vector<1x2xi32>
    %59 = vector.broadcast %58 : vector<1x2xi32> to vector<16x2xi32>
    %60 = arith.cmpi eq, %59, %2 : vector<16x2xi32>
    %61 = arith.extui %60 : vector<16x2xi1> to vector<16x2xi32>
    %62 = arith.sitofp %61 : vector<16x2xi32> to vector<16x2xf32>
    %63 = arith.truncf %62 : vector<16x2xf32> to vector<16x2xbf16>
    %64 = arith.addf %56, %63 : vector<16x2xbf16>
    %c7_i32_8 = arith.constant 7 : i32
    %c0_9 = arith.constant 0 : index
    %c0_10 = arith.constant 0 : index
    %65 = vector.load %arg2[%c0_9, %c0_10] : memref<384x16xbf16, #tpu.memory_space<vmem>>, vector<384x16xbf16>
    %cst = arith.constant dense<0.000000e+00> : vector<384x2xf32>
    %66 = tpu.matmul %65, %64, %cst {dimension_numbers = #tpu.dot_dimension_numbers<[1], [0], [0], [1], [0, 0, 1, 1], [], []>} : vector<384x16xbf16>, vector<16x2xbf16>, vector<384x2xf32> -> vector<384x2xf32>
    %c0_11 = arith.constant 0 : index
    %c0_12 = arith.constant 0 : index
    %67 = vector.load %arg3[%c0_11, %c0_12] : memref<384x1xf32, #tpu.memory_space<vmem>>, vector<384x1xf32>
    %68 = vector.broadcast %67 : vector<384x1xf32> to vector<384x2xf32>
    %69 = arith.addf %66, %68 : vector<384x2xf32>
    %70 = vector.extract_strided_slice %69 {offsets = [0, 0], sizes = [128, 2], strides = [1, 1]} : vector<384x2xf32> to vector<128x2xf32>
    %71 = arith.negf %70 : vector<128x2xf32>
    %72 = math.exp %71 : vector<128x2xf32>
    %cst_13 = arith.constant 1.000000e+00 : f32
    %73 = vector.broadcast %cst_13 : f32 to vector<128x2xf32>
    %74 = arith.addf %73, %72 : vector<128x2xf32>
    %75 = arith.divf %73, %74 : vector<128x2xf32>
    %76 = vector.extract_strided_slice %69 {offsets = [128, 0], sizes = [128, 2], strides = [1, 1]} : vector<384x2xf32> to vector<128x2xf32>
    %77 = math.tanh %76 : vector<128x2xf32>
    %78 = vector.extract_strided_slice %69 {offsets = [256, 0], sizes = [128, 2], strides = [1, 1]} : vector<384x2xf32> to vector<128x2xf32>
    %79 = arith.negf %78 : vector<128x2xf32>
    %80 = math.exp %79 : vector<128x2xf32>
    %cst_14 = arith.constant 1.000000e+00 : f32
    %81 = vector.broadcast %cst_14 : f32 to vector<128x2xf32>
    %82 = arith.addf %81, %80 : vector<128x2xf32>
    %83 = arith.divf %81, %82 : vector<128x2xf32>
    %84 = arith.mulf %75, %77 : vector<128x2xf32>
    %85 = math.tanh %84 : vector<128x2xf32>
    %86 = arith.mulf %83, %85 : vector<128x2xf32>
    %87 = arith.truncf %86 : vector<128x2xf32> to vector<128x2xbf16>
    %c0_15 = arith.constant 0 : index
    %c0_16 = arith.constant 0 : index
    %88 = vector.load %arg4[%c0_15, %c0_16] : memref<2x128xbf16, #tpu.memory_space<vmem>>, vector<2x128xbf16>
    %cst_17 = arith.constant dense<0.000000e+00> : vector<2x2xf32>
    %89 = tpu.matmul %88, %87, %cst_17 {dimension_numbers = #tpu.dot_dimension_numbers<[1], [0], [0], [1], [0, 0, 1, 1], [], []>} : vector<2x128xbf16>, vector<128x2xbf16>, vector<2x2xf32> -> vector<2x2xf32>
    %c0_18 = arith.constant 0 : index
    %c0_19 = arith.constant 0 : index
    %90 = vector.load %arg5[%c0_18, %c0_19] : memref<2x1xf32, #tpu.memory_space<vmem>>, vector<2x1xf32>
    %91 = vector.broadcast %90 : vector<2x1xf32> to vector<2x2xf32>
    %92 = arith.addf %89, %91 : vector<2x2xf32>
    %93 = vector.extract_strided_slice %92 {offsets = [0, 0], sizes = [1, 2], strides = [1, 1]} : vector<2x2xf32> to vector<1x2xf32>
    %94 = vector.extract_strided_slice %92 {offsets = [1, 0], sizes = [1, 2], strides = [1, 1]} : vector<2x2xf32> to vector<1x2xf32>
    %95 = arith.maximumf %93, %94 : vector<1x2xf32>
    %96 = arith.subf %93, %95 : vector<1x2xf32>
    %97 = math.exp %96 : vector<1x2xf32>
    %98 = arith.subf %94, %95 : vector<1x2xf32>
    %99 = math.exp %98 : vector<1x2xf32>
    %100 = arith.addf %97, %99 : vector<1x2xf32>
    %101 = math.log %100 : vector<1x2xf32>
    %102 = arith.addf %95, %101 : vector<1x2xf32>
    %103 = vector.broadcast %102 : vector<1x2xf32> to vector<2x2xf32>
    %104 = arith.subf %92, %103 : vector<2x2xf32>
    %c0_20 = arith.constant 0 : index
    %c0_21 = arith.constant 0 : index
    %105 = vector.load %arg6[%c0_20, %c0_21] : memref<2x2xf32, #tpu.memory_space<vmem>>, vector<2x2xf32>
    tpu.vector_store %arg6[%c0_20, %c0_21], %104 {strides = array<i32>} : memref<2x2xf32, #tpu.memory_space<vmem>>, vector<2x2xf32>,
    return
  }
  func.func @transform_0(%arg0: i32) -> (i32, i32) {
    %c0_i32 = arith.constant 0 : i32
    %c0_i32_0 = arith.constant 0 : i32
    return %c0_i32, %arg0 : i32, i32
  }
  func.func @transform_1(%arg0: i32) -> (i32, i32) {
    %c0_i32 = arith.constant 0 : i32
    %c0_i32_0 = arith.constant 0 : i32
    %c0_i32_1 = arith.constant 0 : i32
    return %c0_i32, %c0_i32_0 : i32, i32
  }
  func.func @transform_2(%arg0: i32) -> (i32, i32) {
    %c0_i32 = arith.constant 0 : i32
    %c0_i32_0 = arith.constant 0 : i32
    %c0_i32_1 = arith.constant 0 : i32
    return %c0_i32, %c0_i32_0 : i32, i32
  }
  func.func @transform_3(%arg0: i32) -> (i32, i32) {
    %c0_i32 = arith.constant 0 : i32
    %c0_i32_0 = arith.constant 0 : i32
    %c0_i32_1 = arith.constant 0 : i32
    return %c0_i32, %c0_i32_0 : i32, i32
  }
  func.func @transform_4(%arg0: i32) -> (i32, i32) {
    %c0_i32 = arith.constant 0 : i32
    %c0_i32_0 = arith.constant 0 : i32
    %c0_i32_1 = arith.constant 0 : i32
    return %c0_i32, %c0_i32_0 : i32, i32
  }
  func.func @transform_5(%arg0: i32) -> (i32, i32) {
    %c0_i32 = arith.constant 0 : i32
    %c0_i32_0 = arith.constant 0 : i32
    return %c0_i32, %arg0 : i32, i32
  }
}

</mosaic_0001>

<llo_original>
// kernel: tpu_custom_call.1
$region0: #{tpu_custom_call.1}
  #allocation0 [shape = 'u32[]', space=smem, size = 0x4, offset = 0x4, fixed_abs, tag = 'smem constant byte address 0x4 - core index']
  #allocation1 [shape = 'u32[72,128]{1,0:T(1,128)}', space=vmem, size = 0x9000, scoped, tag = 'internal scratch']
  %s0 = inlined_call_operand.vmem [shape: s32[8,2], index: 0, kind: input, shape index: {}]
  %s1 = inlined_call_operand.vmem [shape: bf16[384,16], index: 1, kind: input, shape index: {}]
  %s2 = inlined_call_operand.vmem [shape: f32[384,1], index: 2, kind: input, shape index: {}]
  %s3 = inlined_call_operand.vmem [shape: bf16[2,128], index: 3, kind: input, shape index: {}]
  %s4 = inlined_call_operand.vmem [shape: f32[2,1], index: 4, kind: input, shape index: {}]
  %s5 = inlined_call_operand.hbm [shape: f32[2,2], index: 5, kind: output, shape index: {}]
  %s6 = sld [smem:[#allocation0]]
  $region30: #{tpu_custom_call.1} parent=0
    _
  %s8 = ssub.s32 1, %s6
  %s9 = scalar_select 0, %s8, %s6
  $region1: #{tpu_custom_call.1} parent=0
    #allocation2 [shape = 'u8[1024]{0}', space=vmem, size = 0x400, scoped, tag = 'output window, operand 0, single buffered']
    #allocation3 [shape = 's32[1]{0}', space=sflag, size = 0x4, scoped, tag = 'scoped memory for tpu_custom_call.1']
    %10 = vsyncpa [#allocation3], 0
    // Predicated region
    $region2: #{tpu_custom_call.1} parent=1 // pred_check
      _
    $region3: #{tpu_custom_call.1} parent=1 // pred_check_branch
      %12 = sbr.rel (0) target = $region5
    $region4: #{tpu_custom_call.1} parent=1 // pred_region
      _
    $region5: #{tpu_custom_call.1} parent=1 // pred_fallthru
      _
    // Predicated region
    $region6: #{tpu_custom_call.1} parent=1 // pred_check
      _
    $region7: #{tpu_custom_call.1} parent=1 // pred_check_branch
      %14 = sbr.rel (0) target = $region9
    $region8: #{tpu_custom_call.1} parent=1 // pred_region
      _
    $region9: #{tpu_custom_call.1} parent=1 // pred_fallthru
      _
    // Predicated region
    $region10: #{tpu_custom_call.1} parent=1 // pred_check
      _
    $region11: #{tpu_custom_call.1} parent=1 // pred_check_branch
      %16 = sbr.rel (0) target = $region13
    $region12: #{tpu_custom_call.1} parent=1 // pred_region
      _
    $region13: #{tpu_custom_call.1} parent=1 // pred_fallthru
      _
    // Predicated region
    $region14: #{tpu_custom_call.1} parent=1 // pred_check
      _
    $region15: #{tpu_custom_call.1} parent=1 // pred_check_branch
      %18 = sbr.rel (0) target = $region17
    $region16: #{tpu_custom_call.1} parent=1 // pred_region
      _
    $region17: #{tpu_custom_call.1} parent=1 // pred_fallthru
      _
    // Predicated region
    $region18: #{tpu_custom_call.1} parent=1 // pred_check
      _
    $region19: #{tpu_custom_call.1} parent=1 // pred_check_branch
      %20 = sbr.rel (0) target = $region21
    $region20: #{tpu_custom_call.1} parent=1 // pred_region
      _
    $region21: #{tpu_custom_call.1} parent=1 // pred_fallthru
      _
    %v22 = vlaneseq
    %v23 = vshrl.u32 %v22, 7
    %v24 = vadd.s32 %v23, 8
    %v25 = vld [vmem:[%s0] sm:$0x1]
    %v26 = vperm.slane %v25, 0
    %vm27 = vcmp.eq.s32.totalorder %v26, %v23
    %vm28 = vcmp.eq.s32.totalorder %v26, %v24
    %v29 = vsel %vm27, 1, 0
    %v30 = vsel %vm28, 1, 0
    %v31 = vcvt.s32.f32 %v29
    %v32 = vcvt.s32.f32 %v30
    %v33 = vpack.c.bf16 %v31, %v31
    %v34 = vpack.c.bf16 %v32, %v32
    %v35 = vld [vmem:[%s0 + $0x1] sm:$0x1]
    %v36 = vperm.slane %v35, 0
    %vm37 = vcmp.eq.s32.totalorder %v36, %v23
    %vm38 = vcmp.eq.s32.totalorder %v36, %v24
    %v39 = vsel %vm37, 1, 0
    %v40 = vsel %vm38, 1, 0
    %v41 = vcvt.s32.f32 %v39
    %v42 = vcvt.s32.f32 %v40
    %v43 = vpack.c.bf16 %v41, %v41
    %v44 = vpack.c.bf16 %v42, %v42
    %v45 = vunpack.c.l.bf16 %v33
    %v46 = vunpack.c.l.bf16 %v34
    %v47 = vunpack.c.l.bf16 %v43
    %v48 = vunpack.c.l.bf16 %v44
    %v49 = vadd.f32 %v45, %v47
    %v50 = vadd.f32 %v46, %v48
    %v51 = vpack.c.bf16 %v49, %v49
    %v52 = vpack.c.bf16 %v50, %v50
    %v53 = vld [vmem:[%s0 + $0x2] sm:$0x1]
    %v54 = vperm.slane %v53, 0
    %vm55 = vcmp.eq.s32.totalorder %v54, %v23
    %vm56 = vcmp.eq.s32.totalorder %v54, %v24
    %v57 = vsel %vm55, 1, 0
    %v58 = vsel %vm56, 1, 0
    %v59 = vcvt.s32.f32 %v57
    %v60 = vcvt.s32.f32 %v58
    %v61 = vpack.c.bf16 %v59, %v59
    %v62 = vpack.c.bf16 %v60, %v60
    %v63 = vunpack.c.l.bf16 %v51
    %v64 = vunpack.c.l.bf16 %v52
    %v65 = vunpack.c.l.bf16 %v61
    %v66 = vunpack.c.l.bf16 %v62
    %v67 = vadd.f32 %v63, %v65
    %v68 = vadd.f32 %v64, %v66
    %v69 = vpack.c.bf16 %v67, %v67
    %v70 = vpack.c.bf16 %v68, %v68
    %v71 = vld [vmem:[%s0 + $0x3] sm:$0x1]
    %v72 = vperm.slane %v71, 0
    %vm73 = vcmp.eq.s32.totalorder %v72, %v23
    %vm74 = vcmp.eq.s32.totalorder %v72, %v24
    %v75 = vsel %vm73, 1, 0
    %v76 = vsel %vm74, 1, 0
    %v77 = vcvt.s32.f32 %v75
    %v78 = vcvt.s32.f32 %v76
    %v79 = vpack.c.bf16 %v77, %v77
    %v80 = vpack.c.bf16 %v78, %v78
    %v81 = vunpack.c.l.bf16 %v69
    %v82 = vunpack.c.l.bf16 %v70
    %v83 = vunpack.c.l.bf16 %v79
    %v84 = vunpack.c.l.bf16 %v80
    %v85 = vadd.f32 %v81, %v83
    %v86 = vadd.f32 %v82, %v84
    %v87 = vpack.c.bf16 %v85, %v85
    %v88 = vpack.c.bf16 %v86, %v86
    %v89 = vld [vmem:[%s0 + $0x4] sm:$0x1]
    %v90 = vperm.slane %v89, 0
    %vm91 = vcmp.eq.s32.totalorder %v90, %v23
    %vm92 = vcmp.eq.s32.totalorder %v90, %v24
    %v93 = vsel %vm91, 1, 0
    %v94 = vsel %vm92, 1, 0
    %v95 = vcvt.s32.f32 %v93
    %v96 = vcvt.s32.f32 %v94
    %v97 = vpack.c.bf16 %v95, %v95
    %v98 = vpack.c.bf16 %v96, %v96
    %v99 = vunpack.c.l.bf16 %v87
    %v100 = vunpack.c.l.bf16 %v88
    %v101 = vunpack.c.l.bf16 %v97
    %v102 = vunpack.c.l.bf16 %v98
    %v103 = vadd.f32 %v99, %v101
    %v104 = vadd.f32 %v100, %v102
    %v105 = vpack.c.bf16 %v103, %v103
    %v106 = vpack.c.bf16 %v104, %v104
    %v107 = vld [vmem:[%s0 + $0x5] sm:$0x1]
    %v108 = vperm.slane %v107, 0
    %vm109 = vcmp.eq.s32.totalorder %v108, %v23
    %vm110 = vcmp.eq.s32.totalorder %v108, %v24
    %v111 = vsel %vm109, 1, 0
    %v112 = vsel %vm110, 1, 0
    %v113 = vcvt.s32.f32 %v111
    %v114 = vcvt.s32.f32 %v112
    %v115 = vpack.c.bf16 %v113, %v113
    %v116 = vpack.c.bf16 %v114, %v114
    %v117 = vunpack.c.l.bf16 %v105
    %v118 = vunpack.c.l.bf16 %v106
    %v119 = vunpack.c.l.bf16 %v115
    %v120 = vunpack.c.l.bf16 %v116
    %v121 = vadd.f32 %v117, %v119
    %v122 = vadd.f32 %v118, %v120
    %v123 = vpack.c.bf16 %v121, %v121
    %v124 = vpack.c.bf16 %v122, %v122
    %v125 = vld [vmem:[%s0 + $0x6] sm:$0x1]
    %v126 = vperm.slane %v125, 0
    %vm127 = vcmp.eq.s32.totalorder %v126, %v23
    %vm128 = vcmp.eq.s32.totalorder %v126, %v24
    %v129 = vsel %vm127, 1, 0
    %v130 = vsel %vm128, 1, 0
    %v131 = vcvt.s32.f32 %v129
    %v132 = vcvt.s32.f32 %v130
    %v133 = vpack.c.bf16 %v131, %v131
    %v134 = vpack.c.bf16 %v132, %v132
    %v135 = vunpack.c.l.bf16 %v123
    %v136 = vunpack.c.l.bf16 %v124
    %v137 = vunpack.c.l.bf16 %v133
    %v138 = vunpack.c.l.bf16 %v134
    %v139 = vadd.f32 %v135, %v137
    %v140 = vadd.f32 %v136, %v138
    %v141 = vpack.c.bf16 %v139, %v139
    %v142 = vpack.c.bf16 %v140, %v140
    %v143 = vld [vmem:[%s0 + $0x7] sm:$0x1]
    %v144 = vperm.slane %v143, 0
    %vm145 = vcmp.eq.s32.totalorder %v144, %v23
    %vm146 = vcmp.eq.s32.totalorder %v144, %v24
    %v147 = vsel %vm145, 1, 0
    %v148 = vsel %vm146, 1, 0
    %v149 = vcvt.s32.f32 %v147
    %v150 = vcvt.s32.f32 %v148
    %v151 = vpack.c.bf16 %v149, %v149
    %v152 = vpack.c.bf16 %v150, %v150
    %v153 = vunpack.c.l.bf16 %v141
    %v154 = vunpack.c.l.bf16 %v142
    %v155 = vunpack.c.l.bf16 %v151
    %v156 = vunpack.c.l.bf16 %v152
    %v157 = vadd.f32 %v153, %v155
    %v158 = vadd.f32 %v154, %v156
    %v159 = vpack.c.bf16 %v158, %v157
    %v160 = vld [vmem:[%s1] sm:$0xf]
    %v161 = vld [vmem:[%s1 + $0x4] sm:$0xf]
    %v162 = vld [vmem:[%s1 + $0x8] sm:$0xf]
    %v163 = vld [vmem:[%s1 + $0xc] sm:$0xf]
    %v164 = vld [vmem:[%s1 + $0x10] sm:$0xf]
    %v165 = vld [vmem:[%s1 + $0x14] sm:$0xf]
    %v166 = vld [vmem:[%s1 + $0x18] sm:$0xf]
    %v167 = vld [vmem:[%s1 + $0x1c] sm:$0xf]
    %v168 = vld [vmem:[%s1 + $0x20] sm:$0xf]
    %v169 = vld [vmem:[%s1 + $0x24] sm:$0xf]
    %v170 = vld [vmem:[%s1 + $0x28] sm:$0xf]
    %v171 = vld [vmem:[%s1 + $0x2c] sm:$0xf]
    %v172 = vld [vmem:[%s1 + $0x30] sm:$0xf]
    %v173 = vld [vmem:[%s1 + $0x34] sm:$0xf]
    %v174 = vld [vmem:[%s1 + $0x38] sm:$0xf]
    %v175 = vld [vmem:[%s1 + $0x3c] sm:$0xf]
    %v176 = vld [vmem:[%s1 + $0x40] sm:$0xf]
    %v177 = vld [vmem:[%s1 + $0x44] sm:$0xf]
    %v178 = vld [vmem:[%s1 + $0x48] sm:$0xf]
    %v179 = vld [vmem:[%s1 + $0x4c] sm:$0xf]
    %v180 = vld [vmem:[%s1 + $0x50] sm:$0xf]
    %v181 = vld [vmem:[%s1 + $0x54] sm:$0xf]
    %v182 = vld [vmem:[%s1 + $0x58] sm:$0xf]
    %v183 = vld [vmem:[%s1 + $0x5c] sm:$0xf]
    %v184 = vld [vmem:[%s1 + $0x60] sm:$0xf]
    %v185 = vld [vmem:[%s1 + $0x64] sm:$0xf]
    %v186 = vld [vmem:[%s1 + $0x68] sm:$0xf]
    %v187 = vld [vmem:[%s1 + $0x6c] sm:$0xf]
    %v188 = vld [vmem:[%s1 + $0x70] sm:$0xf]
    %v189 = vld [vmem:[%s1 + $0x74] sm:$0xf]
    %v190 = vld [vmem:[%s1 + $0x78] sm:$0xf]
    %v191 = vld [vmem:[%s1 + $0x7c] sm:$0xf]
    %v192 = vld [vmem:[%s1 + $0x80] sm:$0xf]
    %v193 = vld [vmem:[%s1 + $0x84] sm:$0xf]
    %v194 = vld [vmem:[%s1 + $0x88] sm:$0xf]
    %v195 = vld [vmem:[%s1 + $0x8c] sm:$0xf]
    %v196 = vld [vmem:[%s1 + $0x90] sm:$0xf]
    %v197 = vld [vmem:[%s1 + $0x94] sm:$0xf]
    %v198 = vld [vmem:[%s1 + $0x98] sm:$0xf]
    %v199 = vld [vmem:[%s1 + $0x9c] sm:$0xf]
    %v200 = vld [vmem:[%s1 + $0xa0] sm:$0xf]
    %v201 = vld [vmem:[%s1 + $0xa4] sm:$0xf]
    %v202 = vld [vmem:[%s1 + $0xa8] sm:$0xf]
    %v203 = vld [vmem:[%s1 + $0xac] sm:$0xf]
    %v204 = vld [vmem:[%s1 + $0xb0] sm:$0xf]
    %v205 = vld [vmem:[%s1 + $0xb4] sm:$0xf]
    %v206 = vld [vmem:[%s1 + $0xb8] sm:$0xf]
    %v207 = vld [vmem:[%s1 + $0xbc] sm:$0xf]
    %v208 = vld [vmem:[%s2] sm:$0xff]
    %v209 = vld [vmem:[%s2 + $0x8] sm:$0xff]
    %v210 = vld [vmem:[%s2 + $0x10] sm:$0xff]
    %v211 = vld [vmem:[%s2 + $0x18] sm:$0xff]
    %v212 = vld [vmem:[%s2 + $0x20] sm:$0xff]
    %v213 = vld [vmem:[%s2 + $0x28] sm:$0xff]
    %v214 = vld [vmem:[%s2 + $0x30] sm:$0xff]
    %v215 = vld [vmem:[%s2 + $0x38] sm:$0xff]
    %v216 = vld [vmem:[%s2 + $0x40] sm:$0xff]
    %v217 = vld [vmem:[%s2 + $0x48] sm:$0xff]
    %v218 = vld [vmem:[%s2 + $0x50] sm:$0xff]
    %v219 = vld [vmem:[%s2 + $0x58] sm:$0xff]
    %v220 = vld [vmem:[%s2 + $0x60] sm:$0xff]
    %v221 = vld [vmem:[%s2 + $0x68] sm:$0xff]
    %v222 = vld [vmem:[%s2 + $0x70] sm:$0xff]
    %v223 = vld [vmem:[%s2 + $0x78] sm:$0xff]
    %v224 = vld [vmem:[%s2 + $0x80] sm:$0xff]
    %v225 = vld [vmem:[%s2 + $0x88] sm:$0xff]
    %v226 = vld [vmem:[%s2 + $0x90] sm:$0xff]
    %v227 = vld [vmem:[%s2 + $0x98] sm:$0xff]
    %v228 = vld [vmem:[%s2 + $0xa0] sm:$0xff]
    %v229 = vld [vmem:[%s2 + $0xa8] sm:$0xff]
    %v230 = vld [vmem:[%s2 + $0xb0] sm:$0xff]
    %v231 = vld [vmem:[%s2 + $0xb8] sm:$0xff]
    %v232 = vld [vmem:[%s2 + $0xc0] sm:$0xff]
    %v233 = vld [vmem:[%s2 + $0xc8] sm:$0xff]
    %v234 = vld [vmem:[%s2 + $0xd0] sm:$0xff]
    %v235 = vld [vmem:[%s2 + $0xd8] sm:$0xff]
    %v236 = vld [vmem:[%s2 + $0xe0] sm:$0xff]
    %v237 = vld [vmem:[%s2 + $0xe8] sm:$0xff]
    %v238 = vld [vmem:[%s2 + $0xf0] sm:$0xff]
    %v239 = vld [vmem:[%s2 + $0xf8] sm:$0xff]
    %v240 = vld [vmem:[%s2 + $0x100] sm:$0xff]
    %v241 = vld [vmem:[%s2 + $0x108] sm:$0xff]
    %v242 = vld [vmem:[%s2 + $0x110] sm:$0xff]
    %v243 = vld [vmem:[%s2 + $0x118] sm:$0xff]
    %v244 = vld [vmem:[%s2 + $0x120] sm:$0xff]
    %v245 = vld [vmem:[%s2 + $0x128] sm:$0xff]
    %v246 = vld [vmem:[%s2 + $0x130] sm:$0xff]
    %v247 = vld [vmem:[%s2 + $0x138] sm:$0xff]
    %v248 = vld [vmem:[%s2 + $0x140] sm:$0xff]
    %v249 = vld [vmem:[%s2 + $0x148] sm:$0xff]
    %v250 = vld [vmem:[%s2 + $0x150] sm:$0xff]
    %v251 = vld [vmem:[%s2 + $0x158] sm:$0xff]
    %v252 = vld [vmem:[%s2 + $0x160] sm:$0xff]
    %v253 = vld [vmem:[%s2 + $0x168] sm:$0xff]
    %v254 = vld [vmem:[%s2 + $0x170] sm:$0xff]
    %v255 = vld [vmem:[%s2 + $0x178] sm:$0xff]
    %257 = vset.pattern.permute.xlu0 0
    %258 = vperm.xlu0 %257, %v208
    %v259 = vpop.permute.xlu0 %258
    %262 = vset.pattern.permute.xlu0 0
    %263 = vperm.xlu0 %262, %v209
    %v264 = vpop.permute.xlu0 %263
    %267 = vset.pattern.permute.xlu0 0
    %268 = vperm.xlu0 %267, %v210
    %v269 = vpop.permute.xlu0 %268
    %272 = vset.pattern.permute.xlu0 0
    %273 = vperm.xlu0 %272, %v211
    %v274 = vpop.permute.xlu0 %273
    %277 = vset.pattern.permute.xlu0 0
    %278 = vperm.xlu0 %277, %v212
    %v279 = vpop.permute.xlu0 %278
    %282 = vset.pattern.permute.xlu0 0
    %283 = vperm.xlu0 %282, %v213
    %v284 = vpop.permute.xlu0 %283
    %287 = vset.pattern.permute.xlu0 0
    %288 = vperm.xlu0 %287, %v214
    %v289 = vpop.permute.xlu0 %288
    %292 = vset.pattern.permute.xlu0 0
    %293 = vperm.xlu0 %292, %v215
    %v294 = vpop.permute.xlu0 %293
    %297 = vset.pattern.permute.xlu0 0
    %298 = vperm.xlu0 %297, %v216
    %v299 = vpop.permute.xlu0 %298
    %302 = vset.pattern.permute.xlu0 0
    %303 = vperm.xlu0 %302, %v217
    %v304 = vpop.permute.xlu0 %303
    %307 = vset.pattern.permute.xlu0 0
    %308 = vperm.xlu0 %307, %v218
    %v309 = vpop.permute.xlu0 %308
    %312 = vset.pattern.permute.xlu0 0
    %313 = vperm.xlu0 %312, %v219
    %v314 = vpop.permute.xlu0 %313
    %317 = vset.pattern.permute.xlu0 0
    %318 = vperm.xlu0 %317, %v220
    %v319 = vpop.permute.xlu0 %318
    %322 = vset.pattern.permute.xlu0 0
    %323 = vperm.xlu0 %322, %v221
    %v324 = vpop.permute.xlu0 %323
    %327 = vset.pattern.permute.xlu0 0
    %328 = vperm.xlu0 %327, %v222
    %v329 = vpop.permute.xlu0 %328
    %332 = vset.pattern.permute.xlu0 0
    %333 = vperm.xlu0 %332, %v223
    %v334 = vpop.permute.xlu0 %333
    %337 = vset.pattern.permute.xlu0 0
    %338 = vperm.xlu0 %337, %v224
    %v339 = vpop.permute.xlu0 %338
    %342 = vset.pattern.permute.xlu0 0
    %343 = vperm.xlu0 %342, %v225
    %v344 = vpop.permute.xlu0 %343
    %347 = vset.pattern.permute.xlu0 0
    %348 = vperm.xlu0 %347, %v226
    %v349 = vpop.permute.xlu0 %348
    %352 = vset.pattern.permute.xlu0 0
    %353 = vperm.xlu0 %352, %v227
    %v354 = vpop.permute.xlu0 %353
    %357 = vset.pattern.permute.xlu0 0
    %358 = vperm.xlu0 %357, %v228
    %v359 = vpop.permute.xlu0 %358
    %362 = vset.pattern.permute.xlu0 0
    %363 = vperm.xlu0 %362, %v229
    %v364 = vpop.permute.xlu0 %363
    %367 = vset.pattern.permute.xlu0 0
    %368 = vperm.xlu0 %367, %v230
    %v369 = vpop.permute.xlu0 %368
    %372 = vset.pattern.permute.xlu0 0
    %373 = vperm.xlu0 %372, %v231
    %v374 = vpop.permute.xlu0 %373
    %377 = vset.pattern.permute.xlu0 0
    %378 = vperm.xlu0 %377, %v232
    %v379 = vpop.permute.xlu0 %378
    %382 = vset.pattern.permute.xlu0 0
    %383 = vperm.xlu0 %382, %v233
    %v384 = vpop.permute.xlu0 %383
    %387 = vset.pattern.permute.xlu0 0
    %388 = vperm.xlu0 %387, %v234
    %v389 = vpop.permute.xlu0 %388
    %392 = vset.pattern.permute.xlu0 0
    %393 = vperm.xlu0 %392, %v235
    %v394 = vpop.permute.xlu0 %393
    %397 = vset.pattern.permute.xlu0 0
    %398 = vperm.xlu0 %397, %v236
    %v399 = vpop.permute.xlu0 %398
    %402 = vset.pattern.permute.xlu0 0
    %403 = vperm.xlu0 %402, %v237
    %v404 = vpop.permute.xlu0 %403
    %407 = vset.pattern.permute.xlu0 0
    %408 = vperm.xlu0 %407, %v238
    %v409 = vpop.permute.xlu0 %408
    %412 = vset.pattern.permute.xlu0 0
    %413 = vperm.xlu0 %412, %v239
    %v414 = vpop.permute.xlu0 %413
    %417 = vset.pattern.permute.xlu0 0
    %418 = vperm.xlu0 %417, %v240
    %v419 = vpop.permute.xlu0 %418
    %422 = vset.pattern.permute.xlu0 0
    %423 = vperm.xlu0 %422, %v241
    %v424 = vpop.permute.xlu0 %423
    %427 = vset.pattern.permute.xlu0 0
    %428 = vperm.xlu0 %427, %v242
    %v429 = vpop.permute.xlu0 %428
    %432 = vset.pattern.permute.xlu0 0
    %433 = vperm.xlu0 %432, %v243
    %v434 = vpop.permute.xlu0 %433
    %437 = vset.pattern.permute.xlu0 0
    %438 = vperm.xlu0 %437, %v244
    %v439 = vpop.permute.xlu0 %438
    %442 = vset.pattern.permute.xlu0 0
    %443 = vperm.xlu0 %442, %v245
    %v444 = vpop.permute.xlu0 %443
    %447 = vset.pattern.permute.xlu0 0
    %448 = vperm.xlu0 %447, %v246
    %v449 = vpop.permute.xlu0 %448
    %452 = vset.pattern.permute.xlu0 0
    %453 = vperm.xlu0 %452, %v247
    %v454 = vpop.permute.xlu0 %453
    %457 = vset.pattern.permute.xlu0 0
    %458 = vperm.xlu0 %457, %v248
    %v459 = vpop.permute.xlu0 %458
    %462 = vset.pattern.permute.xlu0 0
    %463 = vperm.xlu0 %462, %v249
    %v464 = vpop.permute.xlu0 %463
    %467 = vset.pattern.permute.xlu0 0
    %468 = vperm.xlu0 %467, %v250
    %v469 = vpop.permute.xlu0 %468
    %472 = vset.pattern.permute.xlu0 0
    %473 = vperm.xlu0 %472, %v251
    %v474 = vpop.permute.xlu0 %473
    %477 = vset.pattern.permute.xlu0 0
    %478 = vperm.xlu0 %477, %v252
    %v479 = vpop.permute.xlu0 %478
    %482 = vset.pattern.permute.xlu0 0
    %483 = vperm.xlu0 %482, %v253
    %v484 = vpop.permute.xlu0 %483
    %487 = vset.pattern.permute.xlu0 0
    %488 = vperm.xlu0 %487, %v254
    %v489 = vpop.permute.xlu0 %488
    %492 = vset.pattern.permute.xlu0 0
    %493 = vperm.xlu0 %492, %v255
    %v494 = vpop.permute.xlu0 %493
    %v544 = vunpack.c.l.b16 %v160
    %v545 = vunpack.c.l.b16 %v161
    %v546 = vunpack.c.l.b16 %v162
    %v547 = vunpack.c.l.b16 %v163
    %v548 = vunpack.c.l.b16 %v164
    %v549 = vunpack.c.l.b16 %v165
    %v550 = vunpack.c.l.b16 %v166
    %v551 = vunpack.c.l.b16 %v167
    %v552 = vunpack.c.l.b16 %v168
    %v553 = vunpack.c.l.b16 %v169
    %v554 = vunpack.c.l.b16 %v170
    %v555 = vunpack.c.l.b16 %v171
    %v556 = vunpack.c.l.b16 %v172
    %v557 = vunpack.c.l.b16 %v173
    %v558 = vunpack.c.l.b16 %v174
    %v559 = vunpack.c.l.b16 %v175
    %v560 = vunpack.c.l.b16 %v176
    %v561 = vunpack.c.l.b16 %v177
    %v562 = vunpack.c.l.b16 %v178
    %v563 = vunpack.c.l.b16 %v179
    %v564 = vunpack.c.l.b16 %v180
    %v565 = vunpack.c.l.b16 %v181
    %v566 = vunpack.c.l.b16 %v182
    %v567 = vunpack.c.l.b16 %v183
    %v568 = vunpack.c.l.b16 %v184
    %v569 = vunpack.c.l.b16 %v185
    %v570 = vunpack.c.l.b16 %v186
    %v571 = vunpack.c.l.b16 %v187
    %v572 = vunpack.c.l.b16 %v188
    %v573 = vunpack.c.l.b16 %v189
    %v574 = vunpack.c.l.b16 %v190
    %v575 = vunpack.c.l.b16 %v191
    %v576 = vunpack.c.l.b16 %v192
    %v577 = vunpack.c.l.b16 %v193
    %v578 = vunpack.c.l.b16 %v194
    %v579 = vunpack.c.l.b16 %v195
    %v580 = vunpack.c.l.b16 %v196
    %v581 = vunpack.c.l.b16 %v197
    %v582 = vunpack.c.l.b16 %v198
    %v583 = vunpack.c.l.b16 %v199
    %v584 = vunpack.c.l.b16 %v200
    %v585 = vunpack.c.l.b16 %v201
    %v586 = vunpack.c.l.b16 %v202
    %v587 = vunpack.c.l.b16 %v203
    %v588 = vunpack.c.l.b16 %v204
    %v589 = vunpack.c.l.b16 %v205
    %v590 = vunpack.c.l.b16 %v206
    %v591 = vunpack.c.l.b16 %v207
    %v592 = vpack.c.b16 %v545, %v544
    %v593 = vpack.c.b16 %v547, %v546
    %v594 = vpack.c.b16 %v549, %v548
    %v595 = vpack.c.b16 %v551, %v550
    %v596 = vpack.c.b16 %v553, %v552
    %v597 = vpack.c.b16 %v555, %v554
    %v598 = vpack.c.b16 %v557, %v556
    %v599 = vpack.c.b16 %v559, %v558
    %v600 = vpack.c.b16 %v561, %v560
    %v601 = vpack.c.b16 %v563, %v562
    %v602 = vpack.c.b16 %v565, %v564
    %v603 = vpack.c.b16 %v567, %v566
    %v604 = vpack.c.b16 %v569, %v568
    %v605 = vpack.c.b16 %v571, %v570
    %v606 = vpack.c.b16 %v573, %v572
    %v607 = vpack.c.b16 %v575, %v574
    %v608 = vpack.c.b16 %v577, %v576
    %v609 = vpack.c.b16 %v579, %v578
    %v610 = vpack.c.b16 %v581, %v580
    %v611 = vpack.c.b16 %v583, %v582
    %v612 = vpack.c.b16 %v585, %v584
    %v613 = vpack.c.b16 %v587, %v586
    %v614 = vpack.c.b16 %v589, %v588
    %v615 = vpack.c.b16 %v591, %v590
    %vm616 = vcmask 130048
    %v618 = vsel %vm616, %v592, 0
    %v621 = vsel %vm616, %v593, 0
    %v624 = vsel %vm616, %v594, 0
    %v627 = vsel %vm616, %v595, 0
    %v630 = vsel %vm616, %v596, 0
    %v633 = vsel %vm616, %v597, 0
    %v636 = vsel %vm616, %v598, 0
    %v639 = vsel %vm616, %v599, 0
    %v642 = vsel %vm616, %v600, 0
    %v645 = vsel %vm616, %v601, 0
    %v648 = vsel %vm616, %v602, 0
    %v651 = vsel %vm616, %v603, 0
    %v654 = vsel %vm616, %v604, 0
    %v657 = vsel %vm616, %v605, 0
    %v660 = vsel %vm616, %v606, 0
    %v663 = vsel %vm616, %v607, 0
    %v666 = vsel %vm616, %v608, 0
    %v669 = vsel %vm616, %v609, 0
    %v672 = vsel %vm616, %v610, 0
    %v675 = vsel %vm616, %v611, 0
    %v678 = vsel %vm616, %v612, 0
    %v681 = vsel %vm616, %v613, 0
    %v684 = vsel %vm616, %v614, 0
    %v687 = vsel %vm616, %v615, 0
    %689 = vmatpush.bf16.msra.mxu0 0
    %690 = vmatpush.bf16.msra.mxu0 0
    %691 = vmatpush.bf16.msra.mxu0 0
    %692 = vmatpush.bf16.msra.mxu0 0
    %693 = vmatpush.bf16.msra.mxu0 0
    %694 = vmatpush.bf16.msra.mxu0 0
    %695 = vmatpush.bf16.msra.mxu0 0
    %696 = vmatpush.bf16.msra.mxu0 %v159
    %697 = vmatmul.bf16.gmra.mxu0 %v618
    %v698 = vpop.f32.mrf.mxu0
    %v699 = vadd.f32 %v259, %v698
    %v700 = vpop.f32.mrf.mxu0
    %v701 = vadd.f32 %v264, %v700
    %702 = vmatmul.bf16.gmra.mxu0 %v621
    %v703 = vpop.f32.mrf.mxu0
    %v704 = vadd.f32 %v269, %v703
    %v705 = vpop.f32.mrf.mxu0
    %v706 = vadd.f32 %v274, %v705
    %707 = vmatmul.bf16.gmra.mxu0 %v624
    %v708 = vpop.f32.mrf.mxu0
    %v709 = vadd.f32 %v279, %v708
    %v710 = vpop.f32.mrf.mxu0
    %v711 = vadd.f32 %v284, %v710
    %712 = vmatmul.bf16.gmra.mxu0 %v627
    %v713 = vpop.f32.mrf.mxu0
    %v714 = vadd.f32 %v289, %v713
    %v715 = vpop.f32.mrf.mxu0
    %v716 = vadd.f32 %v294, %v715
    %717 = vmatmul.bf16.gmra.mxu0 %v630
    %v718 = vpop.f32.mrf.mxu0
    %v719 = vadd.f32 %v299, %v718
    %v720 = vpop.f32.mrf.mxu0
    %v721 = vadd.f32 %v304, %v720
    %722 = vmatmul.bf16.gmra.mxu0 %v633
    %v723 = vpop.f32.mrf.mxu0
    %v724 = vadd.f32 %v309, %v723
    %v725 = vpop.f32.mrf.mxu0
    %v726 = vadd.f32 %v314, %v725
    %727 = vmatmul.bf16.gmra.mxu0 %v636
    %v728 = vpop.f32.mrf.mxu0
    %v729 = vadd.f32 %v319, %v728
    %v730 = vpop.f32.mrf.mxu0
    %v731 = vadd.f32 %v324, %v730
    %732 = vmatmul.bf16.gmra.mxu0 %v639
    %v733 = vpop.f32.mrf.mxu0
    %v734 = vadd.f32 %v329, %v733
    %v735 = vpop.f32.mrf.mxu0
    %v736 = vadd.f32 %v334, %v735
    %737 = vmatmul.bf16.gmra.mxu0 %v642
    %v738 = vpop.f32.mrf.mxu0
    %v739 = vadd.f32 %v339, %v738
    %v740 = vpop.f32.mrf.mxu0
    %v741 = vadd.f32 %v344, %v740
    %742 = vmatmul.bf16.gmra.mxu0 %v645
    %v743 = vpop.f32.mrf.mxu0
    %v744 = vadd.f32 %v349, %v743
    %v745 = vpop.f32.mrf.mxu0
    %v746 = vadd.f32 %v354, %v745
    %747 = vmatmul.bf16.gmra.mxu0 %v648
    %v748 = vpop.f32.mrf.mxu0
    %v749 = vadd.f32 %v359, %v748
    %v750 = vpop.f32.mrf.mxu0
    %v751 = vadd.f32 %v364, %v750
    %752 = vmatmul.bf16.gmra.mxu0 %v651
    %v753 = vpop.f32.mrf.mxu0
    %v754 = vadd.f32 %v369, %v753
    %v755 = vpop.f32.mrf.mxu0
    %v756 = vadd.f32 %v374, %v755
    %757 = vmatmul.bf16.gmra.mxu0 %v654
    %v758 = vpop.f32.mrf.mxu0
    %v759 = vadd.f32 %v379, %v758
    %v760 = vpop.f32.mrf.mxu0
    %v761 = vadd.f32 %v384, %v760
    %762 = vmatmul.bf16.gmra.mxu0 %v657
    %v763 = vpop.f32.mrf.mxu0
    %v764 = vadd.f32 %v389, %v763
    %v765 = vpop.f32.mrf.mxu0
    %v766 = vadd.f32 %v394, %v765
    %767 = vmatmul.bf16.gmra.mxu0 %v660
    %v768 = vpop.f32.mrf.mxu0
    %v769 = vadd.f32 %v399, %v768
    %v770 = vpop.f32.mrf.mxu0
    %v771 = vadd.f32 %v404, %v770
    %772 = vmatmul.bf16.gmra.mxu0 %v663
    %v773 = vpop.f32.mrf.mxu0
    %v774 = vadd.f32 %v409, %v773
    %v775 = vpop.f32.mrf.mxu0
    %v776 = vadd.f32 %v414, %v775
    %777 = vmatmul.bf16.gmra.mxu0 %v666
    %v778 = vpop.f32.mrf.mxu0
    %v779 = vadd.f32 %v419, %v778
    %v780 = vpop.f32.mrf.mxu0
    %v781 = vadd.f32 %v424, %v780
    %782 = vmatmul.bf16.gmra.mxu0 %v669
    %v783 = vpop.f32.mrf.mxu0
    %v784 = vadd.f32 %v429, %v783
    %v785 = vpop.f32.mrf.mxu0
    %v786 = vadd.f32 %v434, %v785
    %787 = vmatmul.bf16.gmra.mxu0 %v672
    %v788 = vpop.f32.mrf.mxu0
    %v789 = vadd.f32 %v439, %v788
    %v790 = vpop.f32.mrf.mxu0
    %v791 = vadd.f32 %v444, %v790
    %792 = vmatmul.bf16.gmra.mxu0 %v675
    %v793 = vpop.f32.mrf.mxu0
    %v794 = vadd.f32 %v449, %v793
    %v795 = vpop.f32.mrf.mxu0
    %v796 = vadd.f32 %v454, %v795
    %797 = vmatmul.bf16.gmra.mxu0 %v678
    %v798 = vpop.f32.mrf.mxu0
    %v799 = vadd.f32 %v459, %v798
    %v800 = vpop.f32.mrf.mxu0
    %v801 = vadd.f32 %v464, %v800
    %802 = vmatmul.bf16.gmra.mxu0 %v681
    %v803 = vpop.f32.mrf.mxu0
    %v804 = vadd.f32 %v469, %v803
    %v805 = vpop.f32.mrf.mxu0
    %v806 = vadd.f32 %v474, %v805
    %807 = vmatmul.bf16.gmra.mxu0 %v684
    %v808 = vpop.f32.mrf.mxu0
    %v809 = vadd.f32 %v479, %v808
    %v810 = vpop.f32.mrf.mxu0
    %v811 = vadd.f32 %v484, %v810
    %812 = vmatmul.bf16.gmra.mxu0 %v687
    %v813 = vpop.f32.mrf.mxu0
    %v814 = vadd.f32 %v489, %v813
    %v815 = vpop.f32.mrf.mxu0
    %v816 = vadd.f32 %v494, %v815
    %817 = vdwg.mxu0
    %v818 = vxor.u32 %v699, 2147483648
    %v819 = vxor.u32 %v701, 2147483648
    %v820 = vxor.u32 %v704, 2147483648
    %v821 = vxor.u32 %v706, 2147483648
    %v822 = vxor.u32 %v709, 2147483648
    %v823 = vxor.u32 %v711, 2147483648
    %v824 = vxor.u32 %v714, 2147483648
    %v825 = vxor.u32 %v716, 2147483648
    %v826 = vxor.u32 %v719, 2147483648
    %v827 = vxor.u32 %v721, 2147483648
    %v828 = vxor.u32 %v724, 2147483648
    %v829 = vxor.u32 %v726, 2147483648
    %v830 = vxor.u32 %v729, 2147483648
    %v831 = vxor.u32 %v731, 2147483648
    %v832 = vxor.u32 %v734, 2147483648
    %v833 = vxor.u32 %v736, 2147483648
    %v834 = vmul.f32 %v818, 1.442695
    %v835 = vpow.pop %v834
    %v836 = vmul.f32 %v819, 1.442695
    %v837 = vpow.pop %v836
    %v838 = vmul.f32 %v820, 1.442695
    %v839 = vpow.pop %v838
    %v840 = vmul.f32 %v821, 1.442695
    %v841 = vpow.pop %v840
    %v842 = vmul.f32 %v822, 1.442695
    %v843 = vpow.pop %v842
    %v844 = vmul.f32 %v823, 1.442695
    %v845 = vpow.pop %v844
    %v846 = vmul.f32 %v824, 1.442695
    %v847 = vpow.pop %v846
    %v848 = vmul.f32 %v825, 1.442695
    %v849 = vpow.pop %v848
    %v850 = vmul.f32 %v826, 1.442695
    %v851 = vpow.pop %v850
    %v852 = vmul.f32 %v827, 1.442695
    %v853 = vpow.pop %v852
    %v854 = vmul.f32 %v828, 1.442695
    %v855 = vpow.pop %v854
    %v856 = vmul.f32 %v829, 1.442695
    %v857 = vpow.pop %v856
    %v858 = vmul.f32 %v830, 1.442695
    %v859 = vpow.pop %v858
    %v860 = vmul.f32 %v831, 1.442695
    %v861 = vpow.pop %v860
    %v862 = vmul.f32 %v832, 1.442695
    %v863 = vpow.pop %v862
    %v864 = vmul.f32 %v833, 1.442695
    %v865 = vpow.pop %v864
    %v866 = vadd.f32 %v835, 1.0
    %v867 = vadd.f32 %v837, 1.0
    %v868 = vadd.f32 %v839, 1.0
    %v869 = vadd.f32 %v841, 1.0
    %v870 = vadd.f32 %v843, 1.0
    %v871 = vadd.f32 %v845, 1.0
    %v872 = vadd.f32 %v847, 1.0
    %v873 = vadd.f32 %v849, 1.0
    %v874 = vadd.f32 %v851, 1.0
    %v875 = vadd.f32 %v853, 1.0
    %v876 = vadd.f32 %v855, 1.0
    %v877 = vadd.f32 %v857, 1.0
    %v878 = vadd.f32 %v859, 1.0
    %v879 = vadd.f32 %v861, 1.0
    %v880 = vadd.f32 %v863, 1.0
    %v881 = vadd.f32 %v865, 1.0
    %v882 = vrcp.pop %v866
    %v883 = vmul.f32 %v866, %v882
    %v884 = vsub.f32 1.0, %v883
    %v885 = vmul.f32 %v882, %v884
    %v886 = vadd.f32 %v882, %v885
    %vm887 = vweird.f32 %v866
    %vm888 = vweird.f32 %v882
    %vm889 = vmor %vm887, %vm888
    %v890 = vsel %vm889, %v882, %v886
    %v891 = vand.u32 2147483647, %v866
    %vm892 = vcmp.eq.f32.partialorder %v891, 8.507059e+37
    %v893 = vand.u32 %v866, 2147483648
    %v894 = vor.u32 1.1754944e-38, %v893
    %v895 = vsel %vm892, %v894, %v890
    %v896 = vmul.f32 1.0, %v895
    %v897 = vrcp.pop %v867
    %v898 = vmul.f32 %v867, %v897
    %v899 = vsub.f32 1.0, %v898
    %v900 = vmul.f32 %v897, %v899
    %v901 = vadd.f32 %v897, %v900
    %vm902 = vweird.f32 %v867
    %vm903 = vweird.f32 %v897
    %vm904 = vmor %vm902, %vm903
    %v905 = vsel %vm904, %v897, %v901
    %v906 = vand.u32 2147483647, %v867
    %vm907 = vcmp.eq.f32.partialorder %v906, 8.507059e+37
    %v908 = vand.u32 %v867, 2147483648
    %v909 = vor.u32 1.1754944e-38, %v908
    %v910 = vsel %vm907, %v909, %v905
    %v911 = vmul.f32 1.0, %v910
    %v912 = vrcp.pop %v868
    %v913 = vmul.f32 %v868, %v912
    %v914 = vsub.f32 1.0, %v913
    %v915 = vmul.f32 %v912, %v914
    %v916 = vadd.f32 %v912, %v915
    %vm917 = vweird.f32 %v868
    %vm918 = vweird.f32 %v912
    %vm919 = vmor %vm917, %vm918
    %v920 = vsel %vm919, %v912, %v916
    %v921 = vand.u32 2147483647, %v868
    %vm922 = vcmp.eq.f32.partialorder %v921, 8.507059e+37
    %v923 = vand.u32 %v868, 2147483648
    %v924 = vor.u32 1.1754944e-38, %v923
    %v925 = vsel %vm922, %v924, %v920
    %v926 = vmul.f32 1.0, %v925
    %v927 = vrcp.pop %v869
    %v928 = vmul.f32 %v869, %v927
    %v929 = vsub.f32 1.0, %v928
    %v930 = vmul.f32 %v927, %v929
    %v931 = vadd.f32 %v927, %v930
    %vm932 = vweird.f32 %v869
    %vm933 = vweird.f32 %v927
    %vm934 = vmor %vm932, %vm933
    %v935 = vsel %vm934, %v927, %v931
    %v936 = vand.u32 2147483647, %v869
    %vm937 = vcmp.eq.f32.partialorder %v936, 8.507059e+37
    %v938 = vand.u32 %v869, 2147483648
    %v939 = vor.u32 1.1754944e-38, %v938
    %v940 = vsel %vm937, %v939, %v935
    %v941 = vmul.f32 1.0, %v940
    %v942 = vrcp.pop %v870
    %v943 = vmul.f32 %v870, %v942
    %v944 = vsub.f32 1.0, %v943
    %v945 = vmul.f32 %v942, %v944
    %v946 = vadd.f32 %v942, %v945
    %vm947 = vweird.f32 %v870
    %vm948 = vweird.f32 %v942
    %vm949 = vmor %vm947, %vm948
    %v950 = vsel %vm949, %v942, %v946
    %v951 = vand.u32 2147483647, %v870
    %vm952 = vcmp.eq.f32.partialorder %v951, 8.507059e+37
    %v953 = vand.u32 %v870, 2147483648
    %v954 = vor.u32 1.1754944e-38, %v953
    %v955 = vsel %vm952, %v954, %v950
    %v956 = vmul.f32 1.0, %v955
    %v957 = vrcp.pop %v871
    %v958 = vmul.f32 %v871, %v957
    %v959 = vsub.f32 1.0, %v958
    %v960 = vmul.f32 %v957, %v959
    %v961 = vadd.f32 %v957, %v960
    %vm962 = vweird.f32 %v871
    %vm963 = vweird.f32 %v957
    %vm964 = vmor %vm962, %vm963
    %v965 = vsel %vm964, %v957, %v961
    %v966 = vand.u32 2147483647, %v871
    %vm967 = vcmp.eq.f32.partialorder %v966, 8.507059e+37
    %v968 = vand.u32 %v871, 2147483648
    %v969 = vor.u32 1.1754944e-38, %v968
    %v970 = vsel %vm967, %v969, %v965
    %v971 = vmul.f32 1.0, %v970
    %v972 = vrcp.pop %v872
    %v973 = vmul.f32 %v872, %v972
    %v974 = vsub.f32 1.0, %v973
    %v975 = vmul.f32 %v972, %v974
    %v976 = vadd.f32 %v972, %v975
    %vm977 = vweird.f32 %v872
    %vm978 = vweird.f32 %v972
    %vm979 = vmor %vm977, %vm978
    %v980 = vsel %vm979, %v972, %v976
    %v981 = vand.u32 2147483647, %v872
    %vm982 = vcmp.eq.f32.partialorder %v981, 8.507059e+37
    %v983 = vand.u32 %v872, 2147483648
    %v984 = vor.u32 1.1754944e-38, %v983
    %v985 = vsel %vm982, %v984, %v980
    %v986 = vmul.f32 1.0, %v985
    %v987 = vrcp.pop %v873
    %v988 = vmul.f32 %v873, %v987
    %v989 = vsub.f32 1.0, %v988
    %v990 = vmul.f32 %v987, %v989
    %v991 = vadd.f32 %v987, %v990
    %vm992 = vweird.f32 %v873
    %vm993 = vweird.f32 %v987
    %vm994 = vmor %vm992, %vm993
    %v995 = vsel %vm994, %v987, %v991
    %v996 = vand.u32 2147483647, %v873
    %vm997 = vcmp.eq.f32.partialorder %v996, 8.507059e+37
    %v998 = vand.u32 %v873, 2147483648
    %v999 = vor.u32 1.1754944e-38, %v998
    %v1000 = vsel %vm997, %v999, %v995
    %v1001 = vmul.f32 1.0, %v1000
    %v1002 = vrcp.pop %v874
    %v1003 = vmul.f32 %v874, %v1002
    %v1004 = vsub.f32 1.0, %v1003
    %v1005 = vmul.f32 %v1002, %v1004
    %v1006 = vadd.f32 %v1002, %v1005
    %vm1007 = vweird.f32 %v874
    %vm1008 = vweird.f32 %v1002
    %vm1009 = vmor %vm1007, %vm1008
    %v1010 = vsel %vm1009, %v1002, %v1006
    %v1011 = vand.u32 2147483647, %v874
    %vm1012 = vcmp.eq.f32.partialorder %v1011, 8.507059e+37
    %v1013 = vand.u32 %v874, 2147483648
    %v1014 = vor.u32 1.1754944e-38, %v1013
    %v1015 = vsel %vm1012, %v1014, %v1010
    %v1016 = vmul.f32 1.0, %v1015
    %v1017 = vrcp.pop %v875
    %v1018 = vmul.f32 %v875, %v1017
    %v1019 = vsub.f32 1.0, %v1018
    %v1020 = vmul.f32 %v1017, %v1019
    %v1021 = vadd.f32 %v1017, %v1020
    %vm1022 = vweird.f32 %v875
    %vm1023 = vweird.f32 %v1017
    %vm1024 = vmor %vm1022, %vm1023
    %v1025 = vsel %vm1024, %v1017, %v1021
    %v1026 = vand.u32 2147483647, %v875
    %vm1027 = vcmp.eq.f32.partialorder %v1026, 8.507059e+37
    %v1028 = vand.u32 %v875, 2147483648
    %v1029 = vor.u32 1.1754944e-38, %v1028
    %v1030 = vsel %vm1027, %v1029, %v1025
    %v1031 = vmul.f32 1.0, %v1030
    %v1032 = vrcp.pop %v876
    %v1033 = vmul.f32 %v876, %v1032
    %v1034 = vsub.f32 1.0, %v1033
    %v1035 = vmul.f32 %v1032, %v1034
    %v1036 = vadd.f32 %v1032, %v1035
    %vm1037 = vweird.f32 %v876
    %vm1038 = vweird.f32 %v1032
    %vm1039 = vmor %vm1037, %vm1038
    %v1040 = vsel %vm1039, %v1032, %v1036
    %v1041 = vand.u32 2147483647, %v876
    %vm1042 = vcmp.eq.f32.partialorder %v1041, 8.507059e+37
    %v1043 = vand.u32 %v876, 2147483648
    %v1044 = vor.u32 1.1754944e-38, %v1043
    %v1045 = vsel %vm1042, %v1044, %v1040
    %v1046 = vmul.f32 1.0, %v1045
    %v1047 = vrcp.pop %v877
    %v1048 = vmul.f32 %v877, %v1047
    %v1049 = vsub.f32 1.0, %v1048
    %v1050 = vmul.f32 %v1047, %v1049
    %v1051 = vadd.f32 %v1047, %v1050
    %vm1052 = vweird.f32 %v877
    %vm1053 = vweird.f32 %v1047
    %vm1054 = vmor %vm1052, %vm1053
    %v1055 = vsel %vm1054, %v1047, %v1051
    %v1056 = vand.u32 2147483647, %v877
    %vm1057 = vcmp.eq.f32.partialorder %v1056, 8.507059e+37
    %v1058 = vand.u32 %v877, 2147483648
    %v1059 = vor.u32 1.1754944e-38, %v1058
    %v1060 = vsel %vm1057, %v1059, %v1055
    %v1061 = vmul.f32 1.0, %v1060
    %v1062 = vrcp.pop %v878
    %v1063 = vmul.f32 %v878, %v1062
    %v1064 = vsub.f32 1.0, %v1063
    %v1065 = vmul.f32 %v1062, %v1064
    %v1066 = vadd.f32 %v1062, %v1065
    %vm1067 = vweird.f32 %v878
    %vm1068 = vweird.f32 %v1062
    %vm1069 = vmor %vm1067, %vm1068
    %v1070 = vsel %vm1069, %v1062, %v1066
    %v1071 = vand.u32 2147483647, %v878
    %vm1072 = vcmp.eq.f32.partialorder %v1071, 8.507059e+37
    %v1073 = vand.u32 %v878, 2147483648
    %v1074 = vor.u32 1.1754944e-38, %v1073
    %v1075 = vsel %vm1072, %v1074, %v1070
    %v1076 = vmul.f32 1.0, %v1075
    %v1077 = vrcp.pop %v879
    %v1078 = vmul.f32 %v879, %v1077
    %v1079 = vsub.f32 1.0, %v1078
    %v1080 = vmul.f32 %v1077, %v1079
    %v1081 = vadd.f32 %v1077, %v1080
    %vm1082 = vweird.f32 %v879
    %vm1083 = vweird.f32 %v1077
    %vm1084 = vmor %vm1082, %vm1083
    %v1085 = vsel %vm1084, %v1077, %v1081
    %v1086 = vand.u32 2147483647, %v879
    %vm1087 = vcmp.eq.f32.partialorder %v1086, 8.507059e+37
    %v1088 = vand.u32 %v879, 2147483648
    %v1089 = vor.u32 1.1754944e-38, %v1088
    %v1090 = vsel %vm1087, %v1089, %v1085
    %v1091 = vmul.f32 1.0, %v1090
    %v1092 = vrcp.pop %v880
    %v1093 = vmul.f32 %v880, %v1092
    %v1094 = vsub.f32 1.0, %v1093
    %v1095 = vmul.f32 %v1092, %v1094
    %v1096 = vadd.f32 %v1092, %v1095
    %vm1097 = vweird.f32 %v880
    %vm1098 = vweird.f32 %v1092
    %vm1099 = vmor %vm1097, %vm1098
    %v1100 = vsel %vm1099, %v1092, %v1096
    %v1101 = vand.u32 2147483647, %v880
    %vm1102 = vcmp.eq.f32.partialorder %v1101, 8.507059e+37
    %v1103 = vand.u32 %v880, 2147483648
    %v1104 = vor.u32 1.1754944e-38, %v1103
    %v1105 = vsel %vm1102, %v1104, %v1100
    %v1106 = vmul.f32 1.0, %v1105
    %v1107 = vrcp.pop %v881
    %v1108 = vmul.f32 %v881, %v1107
    %v1109 = vsub.f32 1.0, %v1108
    %v1110 = vmul.f32 %v1107, %v1109
    %v1111 = vadd.f32 %v1107, %v1110
    %vm1112 = vweird.f32 %v881
    %vm1113 = vweird.f32 %v1107
    %vm1114 = vmor %vm1112, %vm1113
    %v1115 = vsel %vm1114, %v1107, %v1111
    %v1116 = vand.u32 2147483647, %v881
    %vm1117 = vcmp.eq.f32.partialorder %v1116, 8.507059e+37
    %v1118 = vand.u32 %v881, 2147483648
    %v1119 = vor.u32 1.1754944e-38, %v1118
    %v1120 = vsel %vm1117, %v1119, %v1115
    %v1121 = vmul.f32 1.0, %v1120
    %v1122 = vtanh.pop %v739
    %v1123 = vtanh.pop %v741
    %v1124 = vtanh.pop %v744
    %v1125 = vtanh.pop %v746
    %v1126 = vtanh.pop %v749
    %v1127 = vtanh.pop %v751
    %v1128 = vtanh.pop %v754
    %v1129 = vtanh.pop %v756
    %v1130 = vtanh.pop %v759
    %v1131 = vtanh.pop %v761
    %v1132 = vtanh.pop %v764
    %v1133 = vtanh.pop %v766
    %v1134 = vtanh.pop %v769
    %v1135 = vtanh.pop %v771
    %v1136 = vtanh.pop %v774
    %v1137 = vtanh.pop %v776
    %v1138 = vxor.u32 %v779, 2147483648
    %v1139 = vxor.u32 %v781, 2147483648
    %v1140 = vxor.u32 %v784, 2147483648
    %v1141 = vxor.u32 %v786, 2147483648
    %v1142 = vxor.u32 %v789, 2147483648
    %v1143 = vxor.u32 %v791, 2147483648
    %v1144 = vxor.u32 %v794, 2147483648
    %v1145 = vxor.u32 %v796, 2147483648
    %v1146 = vxor.u32 %v799, 2147483648
    %v1147 = vxor.u32 %v801, 2147483648
    %v1148 = vxor.u32 %v804, 2147483648
    %v1149 = vxor.u32 %v806, 2147483648
    %v1150 = vxor.u32 %v809, 2147483648
    %v1151 = vxor.u32 %v811, 2147483648
    %v1152 = vxor.u32 %v814, 2147483648
    %v1153 = vxor.u32 %v816, 2147483648
    %v1154 = vmul.f32 %v1138, 1.442695
    %v1155 = vpow.pop %v1154
    %v1156 = vmul.f32 %v1139, 1.442695
    %v1157 = vpow.pop %v1156
    %v1158 = vmul.f32 %v1140, 1.442695
    %v1159 = vpow.pop %v1158
    %v1160 = vmul.f32 %v1141, 1.442695
    %v1161 = vpow.pop %v1160
    %v1162 = vmul.f32 %v1142, 1.442695
    %v1163 = vpow.pop %v1162
    %v1164 = vmul.f32 %v1143, 1.442695
    %v1165 = vpow.pop %v1164
    %v1166 = vmul.f32 %v1144, 1.442695
    %v1167 = vpow.pop %v1166
    %v1168 = vmul.f32 %v1145, 1.442695
    %v1169 = vpow.pop %v1168
    %v1170 = vmul.f32 %v1146, 1.442695
    %v1171 = vpow.pop %v1170
    %v1172 = vmul.f32 %v1147, 1.442695
    %v1173 = vpow.pop %v1172
    %v1174 = vmul.f32 %v1148, 1.442695
    %v1175 = vpow.pop %v1174
    %v1176 = vmul.f32 %v1149, 1.442695
    %v1177 = vpow.pop %v1176
    %v1178 = vmul.f32 %v1150, 1.442695
    %v1179 = vpow.pop %v1178
    %v1180 = vmul.f32 %v1151, 1.442695
    %v1181 = vpow.pop %v1180
    %v1182 = vmul.f32 %v1152, 1.442695
    %v1183 = vpow.pop %v1182
    %v1184 = vmul.f32 %v1153, 1.442695
    %v1185 = vpow.pop %v1184
    %v1186 = vadd.f32 %v1155, 1.0
    %v1187 = vadd.f32 %v1157, 1.0
    %v1188 = vadd.f32 %v1159, 1.0
    %v1189 = vadd.f32 %v1161, 1.0
    %v1190 = vadd.f32 %v1163, 1.0
    %v1191 = vadd.f32 %v1165, 1.0
    %v1192 = vadd.f32 %v1167, 1.0
    %v1193 = vadd.f32 %v1169, 1.0
    %v1194 = vadd.f32 %v1171, 1.0
    %v1195 = vadd.f32 %v1173, 1.0
    %v1196 = vadd.f32 %v1175, 1.0
    %v1197 = vadd.f32 %v1177, 1.0
    %v1198 = vadd.f32 %v1179, 1.0
    %v1199 = vadd.f32 %v1181, 1.0
    %v1200 = vadd.f32 %v1183, 1.0
    %v1201 = vadd.f32 %v1185, 1.0
    %v1202 = vrcp.pop %v1186
    %v1203 = vmul.f32 %v1186, %v1202
    %v1204 = vsub.f32 1.0, %v1203
    %v1205 = vmul.f32 %v1202, %v1204
    %v1206 = vadd.f32 %v1202, %v1205
    %vm1207 = vweird.f32 %v1186
    %vm1208 = vweird.f32 %v1202
    %vm1209 = vmor %vm1207, %vm1208
    %v1210 = vsel %vm1209, %v1202, %v1206
    %v1211 = vand.u32 2147483647, %v1186
    %vm1212 = vcmp.eq.f32.partialorder %v1211, 8.507059e+37
    %v1213 = vand.u32 %v1186, 2147483648
    %v1214 = vor.u32 1.1754944e-38, %v1213
    %v1215 = vsel %vm1212, %v1214, %v1210
    %v1216 = vmul.f32 1.0, %v1215
    %v1217 = vrcp.pop %v1187
    %v1218 = vmul.f32 %v1187, %v1217
    %v1219 = vsub.f32 1.0, %v1218
    %v1220 = vmul.f32 %v1217, %v1219
    %v1221 = vadd.f32 %v1217, %v1220
    %vm1222 = vweird.f32 %v1187
    %vm1223 = vweird.f32 %v1217
    %vm1224 = vmor %vm1222, %vm1223
    %v1225 = vsel %vm1224, %v1217, %v1221
    %v1226 = vand.u32 2147483647, %v1187
    %vm1227 = vcmp.eq.f32.partialorder %v1226, 8.507059e+37
    %v1228 = vand.u32 %v1187, 2147483648
    %v1229 = vor.u32 1.1754944e-38, %v1228
    %v1230 = vsel %vm1227, %v1229, %v1225
    %v1231 = vmul.f32 1.0, %v1230
    %v1232 = vrcp.pop %v1188
    %v1233 = vmul.f32 %v1188, %v1232
    %v1234 = vsub.f32 1.0, %v1233
    %v1235 = vmul.f32 %v1232, %v1234
    %v1236 = vadd.f32 %v1232, %v1235
    %vm1237 = vweird.f32 %v1188
    %vm1238 = vweird.f32 %v1232
    %vm1239 = vmor %vm1237, %vm1238
    %v1240 = vsel %vm1239, %v1232, %v1236
    %v1241 = vand.u32 2147483647, %v1188
    %vm1242 = vcmp.eq.f32.partialorder %v1241, 8.507059e+37
    %v1243 = vand.u32 %v1188, 2147483648
    %v1244 = vor.u32 1.1754944e-38, %v1243
    %v1245 = vsel %vm1242, %v1244, %v1240
    %v1246 = vmul.f32 1.0, %v1245
    %v1247 = vrcp.pop %v1189
    %v1248 = vmul.f32 %v1189, %v1247
    %v1249 = vsub.f32 1.0, %v1248
    %v1250 = vmul.f32 %v1247, %v1249
    %v1251 = vadd.f32 %v1247, %v1250
    %vm1252 = vweird.f32 %v1189
    %vm1253 = vweird.f32 %v1247
    %vm1254 = vmor %vm1252, %vm1253
    %v1255 = vsel %vm1254, %v1247, %v1251
    %v1256 = vand.u32 2147483647, %v1189
    %vm1257 = vcmp.eq.f32.partialorder %v1256, 8.507059e+37
    %v1258 = vand.u32 %v1189, 2147483648
    %v1259 = vor.u32 1.1754944e-38, %v1258
    %v1260 = vsel %vm1257, %v1259, %v1255
    %v1261 = vmul.f32 1.0, %v1260
    %v1262 = vrcp.pop %v1190
    %v1263 = vmul.f32 %v1190, %v1262
    %v1264 = vsub.f32 1.0, %v1263
    %v1265 = vmul.f32 %v1262, %v1264
    %v1266 = vadd.f32 %v1262, %v1265
    %vm1267 = vweird.f32 %v1190
    %vm1268 = vweird.f32 %v1262
    %vm1269 = vmor %vm1267, %vm1268
    %v1270 = vsel %vm1269, %v1262, %v1266
    %v1271 = vand.u32 2147483647, %v1190
    %vm1272 = vcmp.eq.f32.partialorder %v1271, 8.507059e+37
    %v1273 = vand.u32 %v1190, 2147483648
    %v1274 = vor.u32 1.1754944e-38, %v1273
    %v1275 = vsel %vm1272, %v1274, %v1270
    %v1276 = vmul.f32 1.0, %v1275
    %v1277 = vrcp.pop %v1191
    %v1278 = vmul.f32 %v1191, %v1277
    %v1279 = vsub.f32 1.0, %v1278
    %v1280 = vmul.f32 %v1277, %v1279
    %v1281 = vadd.f32 %v1277, %v1280
    %vm1282 = vweird.f32 %v1191
    %vm1283 = vweird.f32 %v1277
    %vm1284 = vmor %vm1282, %vm1283
    %v1285 = vsel %vm1284, %v1277, %v1281
    %v1286 = vand.u32 2147483647, %v1191
    %vm1287 = vcmp.eq.f32.partialorder %v1286, 8.507059e+37
    %v1288 = vand.u32 %v1191, 2147483648
    %v1289 = vor.u32 1.1754944e-38, %v1288
    %v1290 = vsel %vm1287, %v1289, %v1285
    %v1291 = vmul.f32 1.0, %v1290
    %v1292 = vrcp.pop %v1192
    %v1293 = vmul.f32 %v1192, %v1292
    %v1294 = vsub.f32 1.0, %v1293
    %v1295 = vmul.f32 %v1292, %v1294
    %v1296 = vadd.f32 %v1292, %v1295
    %vm1297 = vweird.f32 %v1192
    %vm1298 = vweird.f32 %v1292
    %vm1299 = vmor %vm1297, %vm1298
    %v1300 = vsel %vm1299, %v1292, %v1296
    %v1301 = vand.u32 2147483647, %v1192
    %vm1302 = vcmp.eq.f32.partialorder %v1301, 8.507059e+37
    %v1303 = vand.u32 %v1192, 2147483648
    %v1304 = vor.u32 1.1754944e-38, %v1303
    %v1305 = vsel %vm1302, %v1304, %v1300
    %v1306 = vmul.f32 1.0, %v1305
    %v1307 = vrcp.pop %v1193
    %v1308 = vmul.f32 %v1193, %v1307
    %v1309 = vsub.f32 1.0, %v1308
    %v1310 = vmul.f32 %v1307, %v1309
    %v1311 = vadd.f32 %v1307, %v1310
    %vm1312 = vweird.f32 %v1193
    %vm1313 = vweird.f32 %v1307
    %vm1314 = vmor %vm1312, %vm1313
    %v1315 = vsel %vm1314, %v1307, %v1311
    %v1316 = vand.u32 2147483647, %v1193
    %vm1317 = vcmp.eq.f32.partialorder %v1316, 8.507059e+37
    %v1318 = vand.u32 %v1193, 2147483648
    %v1319 = vor.u32 1.1754944e-38, %v1318
    %v1320 = vsel %vm1317, %v1319, %v1315
    %v1321 = vmul.f32 1.0, %v1320
    %v1322 = vrcp.pop %v1194
    %v1323 = vmul.f32 %v1194, %v1322
    %v1324 = vsub.f32 1.0, %v1323
    %v1325 = vmul.f32 %v1322, %v1324
    %v1326 = vadd.f32 %v1322, %v1325
    %vm1327 = vweird.f32 %v1194
    %vm1328 = vweird.f32 %v1322
    %vm1329 = vmor %vm1327, %vm1328
    %v1330 = vsel %vm1329, %v1322, %v1326
    %v1331 = vand.u32 2147483647, %v1194
    %vm1332 = vcmp.eq.f32.partialorder %v1331, 8.507059e+37
    %v1333 = vand.u32 %v1194, 2147483648
    %v1334 = vor.u32 1.1754944e-38, %v1333
    %v1335 = vsel %vm1332, %v1334, %v1330
    %v1336 = vmul.f32 1.0, %v1335
    %v1337 = vrcp.pop %v1195
    %v1338 = vmul.f32 %v1195, %v1337
    %v1339 = vsub.f32 1.0, %v1338
    %v1340 = vmul.f32 %v1337, %v1339
    %v1341 = vadd.f32 %v1337, %v1340
    %vm1342 = vweird.f32 %v1195
    %vm1343 = vweird.f32 %v1337
    %vm1344 = vmor %vm1342, %vm1343
    %v1345 = vsel %vm1344, %v1337, %v1341
    %v1346 = vand.u32 2147483647, %v1195
    %vm1347 = vcmp.eq.f32.partialorder %v1346, 8.507059e+37
    %v1348 = vand.u32 %v1195, 2147483648
    %v1349 = vor.u32 1.1754944e-38, %v1348
    %v1350 = vsel %vm1347, %v1349, %v1345
    %v1351 = vmul.f32 1.0, %v1350
    %v1352 = vrcp.pop %v1196
    %v1353 = vmul.f32 %v1196, %v1352
    %v1354 = vsub.f32 1.0, %v1353
    %v1355 = vmul.f32 %v1352, %v1354
    %v1356 = vadd.f32 %v1352, %v1355
    %vm1357 = vweird.f32 %v1196
    %vm1358 = vweird.f32 %v1352
    %vm1359 = vmor %vm1357, %vm1358
    %v1360 = vsel %vm1359, %v1352, %v1356
    %v1361 = vand.u32 2147483647, %v1196
    %vm1362 = vcmp.eq.f32.partialorder %v1361, 8.507059e+37
    %v1363 = vand.u32 %v1196, 2147483648
    %v1364 = vor.u32 1.1754944e-38, %v1363
    %v1365 = vsel %vm1362, %v1364, %v1360
    %v1366 = vmul.f32 1.0, %v1365
    %v1367 = vrcp.pop %v1197
    %v1368 = vmul.f32 %v1197, %v1367
    %v1369 = vsub.f32 1.0, %v1368
    %v1370 = vmul.f32 %v1367, %v1369
    %v1371 = vadd.f32 %v1367, %v1370
    %vm1372 = vweird.f32 %v1197
    %vm1373 = vweird.f32 %v1367
    %vm1374 = vmor %vm1372, %vm1373
    %v1375 = vsel %vm1374, %v1367, %v1371
    %v1376 = vand.u32 2147483647, %v1197
    %vm1377 = vcmp.eq.f32.partialorder %v1376, 8.507059e+37
    %v1378 = vand.u32 %v1197, 2147483648
    %v1379 = vor.u32 1.1754944e-38, %v1378
    %v1380 = vsel %vm1377, %v1379, %v1375
    %v1381 = vmul.f32 1.0, %v1380
    %v1382 = vrcp.pop %v1198
    %v1383 = vmul.f32 %v1198, %v1382
    %v1384 = vsub.f32 1.0, %v1383
    %v1385 = vmul.f32 %v1382, %v1384
    %v1386 = vadd.f32 %v1382, %v1385
    %vm1387 = vweird.f32 %v1198
    %vm1388 = vweird.f32 %v1382
    %vm1389 = vmor %vm1387, %vm1388
    %v1390 = vsel %vm1389, %v1382, %v1386
    %v1391 = vand.u32 2147483647, %v1198
    %vm1392 = vcmp.eq.f32.partialorder %v1391, 8.507059e+37
    %v1393 = vand.u32 %v1198, 2147483648
    %v1394 = vor.u32 1.1754944e-38, %v1393
    %v1395 = vsel %vm1392, %v1394, %v1390
    %v1396 = vmul.f32 1.0, %v1395
    %v1397 = vrcp.pop %v1199
    %v1398 = vmul.f32 %v1199, %v1397
    %v1399 = vsub.f32 1.0, %v1398
    %v1400 = vmul.f32 %v1397, %v1399
    %v1401 = vadd.f32 %v1397, %v1400
    %vm1402 = vweird.f32 %v1199
    %vm1403 = vweird.f32 %v1397
    %vm1404 = vmor %vm1402, %vm1403
    %v1405 = vsel %vm1404, %v1397, %v1401
    %v1406 = vand.u32 2147483647, %v1199
    %vm1407 = vcmp.eq.f32.partialorder %v1406, 8.507059e+37
    %v1408 = vand.u32 %v1199, 2147483648
    %v1409 = vor.u32 1.1754944e-38, %v1408
    %v1410 = vsel %vm1407, %v1409, %v1405
    %v1411 = vmul.f32 1.0, %v1410
    %v1412 = vrcp.pop %v1200
    %v1413 = vmul.f32 %v1200, %v1412
    %v1414 = vsub.f32 1.0, %v1413
    %v1415 = vmul.f32 %v1412, %v1414
    %v1416 = vadd.f32 %v1412, %v1415
    %vm1417 = vweird.f32 %v1200
    %vm1418 = vweird.f32 %v1412
    %vm1419 = vmor %vm1417, %vm1418
    %v1420 = vsel %vm1419, %v1412, %v1416
    %v1421 = vand.u32 2147483647, %v1200
    %vm1422 = vcmp.eq.f32.partialorder %v1421, 8.507059e+37
    %v1423 = vand.u32 %v1200, 2147483648
    %v1424 = vor.u32 1.1754944e-38, %v1423
    %v1425 = vsel %vm1422, %v1424, %v1420
    %v1426 = vmul.f32 1.0, %v1425
    %v1427 = vrcp.pop %v1201
    %v1428 = vmul.f32 %v1201, %v1427
    %v1429 = vsub.f32 1.0, %v1428
    %v1430 = vmul.f32 %v1427, %v1429
    %v1431 = vadd.f32 %v1427, %v1430
    %vm1432 = vweird.f32 %v1201
    %vm1433 = vweird.f32 %v1427
    %vm1434 = vmor %vm1432, %vm1433
    %v1435 = vsel %vm1434, %v1427, %v1431
    %v1436 = vand.u32 2147483647, %v1201
    %vm1437 = vcmp.eq.f32.partialorder %v1436, 8.507059e+37
    %v1438 = vand.u32 %v1201, 2147483648
    %v1439 = vor.u32 1.1754944e-38, %v1438
    %v1440 = vsel %vm1437, %v1439, %v1435
    %v1441 = vmul.f32 1.0, %v1440
    %v1442 = vmul.f32 %v896, %v1122
    %v1443 = vmul.f32 %v911, %v1123
    %v1444 = vmul.f32 %v926, %v1124
    %v1445 = vmul.f32 %v941, %v1125
    %v1446 = vmul.f32 %v956, %v1126
    %v1447 = vmul.f32 %v971, %v1127
    %v1448 = vmul.f32 %v986, %v1128
    %v1449 = vmul.f32 %v1001, %v1129
    %v1450 = vmul.f32 %v1016, %v1130
    %v1451 = vmul.f32 %v1031, %v1131
    %v1452 = vmul.f32 %v1046, %v1132
    %v1453 = vmul.f32 %v1061, %v1133
    %v1454 = vmul.f32 %v1076, %v1134
    %v1455 = vmul.f32 %v1091, %v1135
    %v1456 = vmul.f32 %v1106, %v1136
    %v1457 = vmul.f32 %v1121, %v1137
    %v1458 = vtanh.pop %v1442
    %v1459 = vtanh.pop %v1443
    %v1460 = vtanh.pop %v1444
    %v1461 = vtanh.pop %v1445
    %v1462 = vtanh.pop %v1446
    %v1463 = vtanh.pop %v1447
    %v1464 = vtanh.pop %v1448
    %v1465 = vtanh.pop %v1449
    %v1466 = vtanh.pop %v1450
    %v1467 = vtanh.pop %v1451
    %v1468 = vtanh.pop %v1452
    %v1469 = vtanh.pop %v1453
    %v1470 = vtanh.pop %v1454
    %v1471 = vtanh.pop %v1455
    %v1472 = vtanh.pop %v1456
    %v1473 = vtanh.pop %v1457
    %v1474 = vmul.f32 %v1216, %v1458
    %v1475 = vmul.f32 %v1231, %v1459
    %v1476 = vmul.f32 %v1246, %v1460
    %v1477 = vmul.f32 %v1261, %v1461
    %v1478 = vmul.f32 %v1276, %v1462
    %v1479 = vmul.f32 %v1291, %v1463
    %v1480 = vmul.f32 %v1306, %v1464
    %v1481 = vmul.f32 %v1321, %v1465
    %v1482 = vmul.f32 %v1336, %v1466
    %v1483 = vmul.f32 %v1351, %v1467
    %v1484 = vmul.f32 %v1366, %v1468
    %v1485 = vmul.f32 %v1381, %v1469
    %v1486 = vmul.f32 %v1396, %v1470
    %v1487 = vmul.f32 %v1411, %v1471
    %v1488 = vmul.f32 %v1426, %v1472
    %v1489 = vmul.f32 %v1441, %v1473
    %v1490 = vpack.c.bf16 %v1475, %v1474
    %v1491 = vpack.c.bf16 %v1477, %v1476
    %v1492 = vpack.c.bf16 %v1479, %v1478
    %v1493 = vpack.c.bf16 %v1481, %v1480
    %v1494 = vpack.c.bf16 %v1483, %v1482
    %v1495 = vpack.c.bf16 %v1485, %v1484
    %v1496 = vpack.c.bf16 %v1487, %v1486
    %v1497 = vpack.c.bf16 %v1489, %v1488
    %v1498 = vld [vmem:[%s3] sm:$0x1]
    %v1499 = vld [vmem:[%s4] sm:$0x3]
    %1501 = vset.pattern.permute.xlu0 0
    %1502 = vperm.xlu0 %1501, %v1499
    %v1503 = vpop.permute.xlu0 %1502
    %1505 = vmatpush.bf16.msra.mxu0 %v1497
    %1506 = vmatpush.bf16.msra.mxu0 %v1496
    %1507 = vmatpush.bf16.msra.mxu0 %v1495
    %1508 = vmatpush.bf16.msra.mxu0 %v1494
    %1509 = vmatpush.bf16.msra.mxu0 %v1493
    %1510 = vmatpush.bf16.msra.mxu0 %v1492
    %1511 = vmatpush.bf16.msra.mxu0 %v1491
    %1512 = vmatpush.bf16.msra.mxu0 %v1490
    %1513 = vmatmul.bf16.gmra.mxu0 %v1498
    %v1514 = vpop.f32.mrf.mxu0
    %v1515 = vadd.f32 %v1503, %v1514
    %v1516 = vpop.f32.mrf.mxu0
    %1517 = vdwg.mxu0
    %v1519 = vrot.slane %v1515, 1
    %v1521 = vmax.f32 %v1515, %v1519
    %v1522 = vsub.f32 %v1515, %v1521
    %v1523 = vmul.f32 %v1522, 1.442695
    %v1524 = vpow.pop %v1523
    %v1526 = vrot.slane %v1521, 7
    %v1528 = vsub.f32 %v1515, %v1526
    %v1529 = vmul.f32 %v1528, 1.442695
    %v1530 = vpow.pop %v1529
    %v1532 = vrot.slane %v1530, 1
    %v1534 = vadd.f32 %v1524, %v1532
    %v1535 = vlog2.pop %v1534
    %v1536 = vmul.f32 %v1535, 0.6931472
    %v1537 = vadd.f32 %v1521, %v1536
    %v1538 = vperm.slane %v1537, 0
    %v1539 = vsub.f32 %v1515, %v1538
    %vm1540 = vcmask 9216
    %1541 = vst.msk [vmem:[#allocation2] sm:$0x3] %vm1540, %v1539
    // Predicated region
    $region22: #{tpu_custom_call.1} parent=1 // pred_check
      _
    $region23: #{tpu_custom_call.1} parent=1 // pred_check_branch
      %1543 = sbr.rel (0) target = $region25
    $region24: #{tpu_custom_call.1} parent=1 // pred_region
      %1545 = vsyncadd [#allocation3], 0
      %s1547 = sshll.u32 [#allocation2], 4
      %s1548 = int_to_ptr.vmem [resolvable:$true] %s1547
      %s1549 = sshll.u32 %s5, 4
      %s1550 = int_to_ptr.hbm [resolvable:$true] %s1549
      %1552 = dma.vmem_to_hbm [thread:$0]  %s1548, 32, %s1550, [#allocation3]
    $region25: #{tpu_custom_call.1} parent=1 // pred_fallthru
      _
    // Predicated region
    $region26: #{tpu_custom_call.1} parent=1 // pred_check
      _
    $region27: #{tpu_custom_call.1} parent=1 // pred_check_branch
      %1554 = sbr.rel (0) target = $region29
    $region28: #{tpu_custom_call.1} parent=1 // pred_region
      %1556 = dma.done [#allocation3], 32
    $region29: #{tpu_custom_call.1} parent=1 // pred_fallthru
      _
    %1557 = vsyncpa [#allocation3], 1

</llo_original>
